<compile_context>
chip_gen: v7x
topology: tpu7x:2x2x1
jax: 0.10.0
libtpu: 0.0.40
codegen_flags: <defaults>
</compile_context>

<pallas_src>
import functools
import math

import jax
import jax.numpy as jnp
from jax.experimental import pallas as pl
from jax.experimental.pallas import tpu as pltpu

LN_EPS = 1e-5


def _layernorm(h, g, b):
    mu = jnp.mean(h, axis=-1, keepdims=True)
    var = jnp.mean((h - mu) ** 2, axis=-1, keepdims=True)
    return (h - mu) * jax.lax.rsqrt(var + LN_EPS) * g + b


def _gelu_new(x):
    # GPT-2 "gelu_new": 0.5*x*(1+tanh(sqrt(2/pi)*(x+0.044715*x^3)))
    c = jnp.sqrt(2.0 / jnp.pi).astype(x.dtype)
    return 0.5 * x * (1.0 + jnp.tanh(c * (x + 0.044715 * x * x * x)))


def gpt2_stage_kernel(x_ref,
                      ln1g_ref, ln1b_ref,
                      wqkv_ref, bqkv_ref,
                      wao_ref, bao_ref,
                      ln2g_ref, ln2b_ref,
                      wfc_ref, bfc_ref,
                      wmp_ref, bmp_ref,
                      o_ref,
                      h_carry,
                      *, n_head):
    l = pl.program_id(1)

    # Layer 0: load this batch row's hidden state into the VMEM-resident carry.
    @pl.when(l == 0)
    def _():
        h_carry[...] = x_ref[0].astype(jnp.float32)

    x = h_carry[...]                      # (S, D) f32 residual stream
    S, D = x.shape
    dh = D // n_head
    bf16 = jnp.bfloat16

    # ---------------- ln_1 + causal self-attention ----------------
    ln1 = _layernorm(x, ln1g_ref[0], ln1b_ref[0])
    qkv = jnp.dot(ln1.astype(bf16), wqkv_ref[0],
                  preferred_element_type=jnp.float32) + bqkv_ref[0]   # (S, 3D)

    scale = 1.0 / math.sqrt(dh)
    # head-major (H, S, dh) views of q/k/v (static lane slices, batched matmuls)
    q3 = jnp.stack([qkv[:, h * dh:(h + 1) * dh]
                    for h in range(n_head)]) * scale
    k3 = jnp.stack([qkv[:, D + h * dh:D + (h + 1) * dh]
                    for h in range(n_head)])
    v3 = jnp.stack([qkv[:, 2 * D + h * dh:2 * D + (h + 1) * dh]
                    for h in range(n_head)])

    scores = jnp.einsum('hqd,hkd->hqk',
                        q3.astype(bf16), k3.astype(bf16),
                        preferred_element_type=jnp.float32)           # (H, S, S)

    rows = jax.lax.broadcasted_iota(jnp.int32, (1, S, S), 1)
    cols = jax.lax.broadcasted_iota(jnp.int32, (1, S, S), 2)
    # HF GPT-2: w = w*b - 1e4*(1-b)  ==  where(allowed, w, -1e4)
    scores = jnp.where(cols <= rows, scores, -1e4)

    scores = scores - jnp.max(scores, axis=-1, keepdims=True)
    p = jnp.exp(scores)
    p = p * pl.reciprocal(jnp.sum(p, axis=-1, keepdims=True), approx=True)

    ctx = jnp.einsum('hqk,hkd->hqd',
                     p.astype(bf16), v3.astype(bf16),
                     preferred_element_type=jnp.float32)              # (H, S, dh)

    a = jnp.concatenate([ctx[h] for h in range(n_head)], axis=-1)     # (S, D)
    a = jnp.dot(a.astype(bf16), wao_ref[0],
                preferred_element_type=jnp.float32) + bao_ref[0]

    x = x + a

    # ---------------- ln_2 + MLP (gelu_new) ----------------
    ln2 = _layernorm(x, ln2g_ref[0], ln2b_ref[0])
    hmid = jnp.dot(ln2.astype(bf16), wfc_ref[0],
                   preferred_element_type=jnp.float32) + bfc_ref[0]
    hmid = _gelu_new(hmid)
    m = jnp.dot(hmid.astype(bf16), wmp_ref[0],
                preferred_element_type=jnp.float32) + bmp_ref[0]

    x = x + m
    h_carry[...] = x

    # Last layer of the stage: write the residual stream back to HBM.
    @pl.when(l == pl.num_programs(1) - 1)
    def _():
        o_ref[0] = x.astype(o_ref.dtype)


def intermediate_stage(x, layer_params, n_head):
    """Run all n_layer//4 blocks of the stage in one fused pallas_call.

    x: (B, S, D) float32; layer_params: list of per-block param dicts.
    """
    B, S, D = x.shape
    L = len(layer_params)

    def stack(name, dtype):
        return jnp.stack([p[name] for p in layer_params]).astype(dtype)

    # Weights stacked along a leading layer axis; big matrices cast to bf16
    # (halves HBM->VMEM DMA + runs MXU at bf16 rate), biases/LN stay f32.
    weights = (
        stack("ln1_g", jnp.float32),          # (L, 1, D)
        stack("ln1_b", jnp.float32),          # (L, 1, D)
        stack("w_qkv", jnp.bfloat16),         # (L, D, 3D)
        stack("b_qkv", jnp.float32),          # (L, 1, 3D)
        stack("w_attn_proj", jnp.bfloat16),   # (L, D, D)
        stack("b_attn_proj", jnp.float32),    # (L, 1, D)
        stack("ln2_g", jnp.float32),          # (L, 1, D)
        stack("ln2_b", jnp.float32),          # (L, 1, D)
        stack("w_fc", jnp.bfloat16),          # (L, D, 4D)
        stack("b_fc", jnp.float32),           # (L, 1, 4D)
        stack("w_mlp_proj", jnp.bfloat16),    # (L, 4D, D)
        stack("b_mlp_proj", jnp.float32),     # (L, 1, D)
    )

    def wspec(arr):
        shp = arr.shape
        nz = len(shp) - 1
        return pl.BlockSpec((1,) + shp[1:], lambda b, l, _nz=nz: (l,) + (0,) * _nz)

    in_specs = [pl.BlockSpec((1, S, D), lambda b, l: (b, 0, 0))] + \
               [wspec(w) for w in weights]
    out_spec = pl.BlockSpec((1, S, D), lambda b, l: (b, 0, 0))

    # Advisory cost estimate (per-block: ~24*S*D^2 matmul flops + attention).
    flops = int(B * L * (24 * S * D * D + 4 * S * S * D))
    transcendentals = int(B * L * (4 * S * D + n_head * S * S + 2 * S))
    bytes_accessed = int(2 * x.size * 4 +
                         sum(int(w.size) * w.dtype.itemsize for w in weights))

    kernel = functools.partial(gpt2_stage_kernel, n_head=n_head)

    return pl.pallas_call(
        kernel,
        out_shape=jax.ShapeDtypeStruct((B, S, D), x.dtype),
        grid_spec=pltpu.PrefetchScalarGridSpec(
            num_scalar_prefetch=0,
            grid=(B, L),                       # batch parallel, layer sequential
            in_specs=in_specs,
            out_specs=out_spec,
            scratch_shapes=[pltpu.VMEM((S, D), jnp.float32)],   # residual carry
        ),
        compiler_params=pltpu.CompilerParams(
            dimension_semantics=("parallel", "arbitrary"),
            vmem_limit_bytes=48 * 1024 * 1024,
        ),
        cost_estimate=pl.CostEstimate(
            flops=flops,
            transcendentals=transcendentals,
            bytes_accessed=bytes_accessed,
        ),
    )(x, *weights)


def init_block_params(key, D):
    ks = jax.random.split(key, 4)
    std = 0.02
    return {
        "ln1_g": jnp.ones((1, D), jnp.float32),
        "ln1_b": jnp.zeros((1, D), jnp.float32),
        "w_qkv": (std * jax.random.normal(ks[0], (D, 3 * D))).astype(jnp.float32),
        "b_qkv": jnp.zeros((1, 3 * D), jnp.float32),
        "w_attn_proj": (std * jax.random.normal(ks[1], (D, D))).astype(jnp.float32),
        "b_attn_proj": jnp.zeros((1, D), jnp.float32),
        "ln2_g": jnp.ones((1, D), jnp.float32),
        "ln2_b": jnp.zeros((1, D), jnp.float32),
        "w_fc": (std * jax.random.normal(ks[2], (D, 4 * D))).astype(jnp.float32),
        "b_fc": jnp.zeros((1, 4 * D), jnp.float32),
        "w_mlp_proj": (std * jax.random.normal(ks[3], (4 * D, D))).astype(jnp.float32),
        "b_mlp_proj": jnp.zeros((1, D), jnp.float32),
    }


def _reference_stage(x, layer_params, n_head):
    """Pure-JAX f32 reference (matches HF GPT-2 Block forward)."""
    B, S, D = x.shape
    dh = D // n_head
    h = x.astype(jnp.float32)
    mask = jnp.tril(jnp.ones((S, S), bool))
    for p in layer_params:
        ln1 = _layernorm(h, p["ln1_g"], p["ln1_b"])
        qkv = ln1 @ p["w_qkv"] + p["b_qkv"]
        q, k, v = jnp.split(qkv, 3, axis=-1)
        q = q.reshape(B, S, n_head, dh).transpose(0, 2, 1, 3)
        k = k.reshape(B, S, n_head, dh).transpose(0, 2, 1, 3)
        v = v.reshape(B, S, n_head, dh).transpose(0, 2, 1, 3)
        w = jnp.einsum('bhqd,bhkd->bhqk', q, k) / math.sqrt(dh)
        w = jnp.where(mask, w, -1e4)
        pa = jax.nn.softmax(w, axis=-1)
        ctx = jnp.einsum('bhqk,bhkd->bhqd', pa, v)
        ctx = ctx.transpose(0, 2, 1, 3).reshape(B, S, D)
        a = ctx @ p["w_attn_proj"] + p["b_attn_proj"]
        h = h + a
        ln2 = _layernorm(h, p["ln2_g"], p["ln2_b"])
        mid = _gelu_new(ln2 @ p["w_fc"] + p["b_fc"])
        h = h + (mid @ p["w_mlp_proj"] + p["b_mlp_proj"])
    return h


if __name__ == "__main__":
    # Small GPT-2-like config: n_layer=8 -> this stage has n_layer//4 = 2 blocks.
    B, S, D, n_head = 2, 16, 64, 4
    n_blocks = 8 // 4

    key = jax.random.PRNGKey(0)
    kx, *kws = jax.random.split(key, 1 + n_blocks)
    x = jax.random.normal(kx, (B, S, D), dtype=jnp.float32)
    layer_params = [init_block_params(k, D) for k in kws]

    out = intermediate_stage(x, layer_params, n_head)
    out = jax.block_until_ready(out)

    assert out.shape == (B, S, D)
    assert bool(jnp.all(jnp.isfinite(out)))

    ref = _reference_stage(x, layer_params, n_head)
    max_err = float(jnp.max(jnp.abs(out - ref)))
    assert max_err < 5e-2, f"max abs error vs f32 reference too large: {max_err}"

    print("KERNEL_OK")
</pallas_src>

<mosaic_0001>
module attributes {stable_mosaic.version = 11 : i64} {
  func.func @gpt2_stage_kernel(%arg0: i32, %arg1: i32, %arg2: memref<1x16x64xf32, #tpu.memory_space<vmem>>, %arg3: memref<1x1x64xf32, #tpu.memory_space<vmem>>, %arg4: memref<1x1x64xf32, #tpu.memory_space<vmem>>, %arg5: memref<1x64x192xbf16, #tpu.memory_space<vmem>>, %arg6: memref<1x1x192xf32, #tpu.memory_space<vmem>>, %arg7: memref<1x64x64xbf16, #tpu.memory_space<vmem>>, %arg8: memref<1x1x64xf32, #tpu.memory_space<vmem>>, %arg9: memref<1x1x64xf32, #tpu.memory_space<vmem>>, %arg10: memref<1x1x64xf32, #tpu.memory_space<vmem>>, %arg11: memref<1x64x256xbf16, #tpu.memory_space<vmem>>, %arg12: memref<1x1x256xf32, #tpu.memory_space<vmem>>, %arg13: memref<1x256x64xbf16, #tpu.memory_space<vmem>>, %arg14: memref<1x1x64xf32, #tpu.memory_space<vmem>>, %arg15: memref<1x16x64xf32, #tpu.memory_space<vmem>>, %arg16: memref<16x64xf32, #tpu.memory_space<vmem>>) attributes {dimension_semantics = [#tpu.dimension_semantics<parallel>, #tpu.dimension_semantics<arbitrary>], iteration_bounds = array<i64: 2, 2>, scalar_prefetch = 0 : i64, scratch_operands = 1 : i64, tpu.core_type = #tpu.core_type<tc>, window_params = [{transform_indices = @transform_0, window_bounds = array<i64: 1, 16, 64>}, {transform_indices = @transform_1, window_bounds = array<i64: 1, 1, 64>}, {transform_indices = @transform_2, window_bounds = array<i64: 1, 1, 64>}, {transform_indices = @transform_3, window_bounds = array<i64: 1, 64, 192>}, {transform_indices = @transform_4, window_bounds = array<i64: 1, 1, 192>}, {transform_indices = @transform_5, window_bounds = array<i64: 1, 64, 64>}, {transform_indices = @transform_6, window_bounds = array<i64: 1, 1, 64>}, {transform_indices = @transform_7, window_bounds = array<i64: 1, 1, 64>}, {transform_indices = @transform_8, window_bounds = array<i64: 1, 1, 64>}, {transform_indices = @transform_9, window_bounds = array<i64: 1, 64, 256>}, {transform_indices = @transform_10, window_bounds = array<i64: 1, 1, 256>}, {transform_indices = @transform_11, window_bounds = array<i64: 1, 256, 64>}, {transform_indices = @transform_12, window_bounds = array<i64: 1, 1, 64>}, {transform_indices = @transform_13, window_bounds = array<i64: 1, 16, 64>}]} {
    %c0_i32 = arith.constant 0 : i32
    %0 = arith.cmpi eq, %arg1, %c0_i32 : i32
    %1 = arith.extui %0 : i1 to i32
    %c0_i32_0 = arith.constant 0 : i32
    %2 = arith.cmpi ne, %1, %c0_i32_0 : i32
    scf.if %2 {
      %c0_64 = arith.constant 0 : index
      %c0_65 = arith.constant 0 : index
      %c0_66 = arith.constant 0 : index
      %169 = vector.load %arg2[%c0_64, %c0_65, %c0_66] : memref<1x16x64xf32, #tpu.memory_space<vmem>>, vector<1x16x64xf32>
      %170 = vector.shape_cast %169 : vector<1x16x64xf32> to vector<16x64xf32>
      %c0_67 = arith.constant 0 : index
      %c0_68 = arith.constant 0 : index
      %171 = vector.load %arg16[%c0_67, %c0_68] : memref<16x64xf32, #tpu.memory_space<vmem>>, vector<16x64xf32>
      tpu.vector_store %arg16[%c0_67, %c0_68], %170 {strides = array<i32>} : memref<16x64xf32, #tpu.memory_space<vmem>>, vector<16x64xf32>,
    } else {
    }
    %c0 = arith.constant 0 : index
    %c0_1 = arith.constant 0 : index
    %3 = vector.load %arg16[%c0, %c0_1] : memref<16x64xf32, #tpu.memory_space<vmem>>, vector<16x64xf32>
    %c0_2 = arith.constant 0 : index
    %c0_3 = arith.constant 0 : index
    %c0_4 = arith.constant 0 : index
    %4 = vector.load %arg3[%c0_2, %c0_3, %c0_4] : memref<1x1x64xf32, #tpu.memory_space<vmem>>, vector<1x1x64xf32>
    %5 = vector.shape_cast %4 : vector<1x1x64xf32> to vector<1x64xf32>
    %c0_5 = arith.constant 0 : index
    %c0_6 = arith.constant 0 : index
    %c0_7 = arith.constant 0 : index
    %6 = vector.load %arg4[%c0_5, %c0_6, %c0_7] : memref<1x1x64xf32, #tpu.memory_space<vmem>>, vector<1x1x64xf32>
    %7 = vector.shape_cast %6 : vector<1x1x64xf32> to vector<1x64xf32>
    %cst = arith.constant dense<0.000000e+00> : vector<16xf32>
    %8 = vector.multi_reduction <add>, %3, %cst [1] : vector<16x64xf32> to vector<16xf32>
    %9 = vector.shape_cast %8 : vector<16xf32> to vector<16x1xf32>
    %cst_8 = arith.constant 6.400000e+01 : f32
    %10 = vector.broadcast %cst_8 : f32 to vector<16x1xf32>
    %11 = arith.divf %9, %10 : vector<16x1xf32>
    %12 = vector.broadcast %11 : vector<16x1xf32> to vector<16x64xf32>
    %13 = arith.subf %3, %12 : vector<16x64xf32>
    %14 = arith.mulf %13, %13 : vector<16x64xf32>
    %cst_9 = arith.constant dense<0.000000e+00> : vector<16xf32>
    %15 = vector.multi_reduction <add>, %14, %cst_9 [1] : vector<16x64xf32> to vector<16xf32>
    %16 = vector.shape_cast %15 : vector<16xf32> to vector<16x1xf32>
    %cst_10 = arith.constant 6.400000e+01 : f32
    %17 = vector.broadcast %cst_10 : f32 to vector<16x1xf32>
    %18 = arith.divf %16, %17 : vector<16x1xf32>
    %19 = vector.broadcast %11 : vector<16x1xf32> to vector<16x64xf32>
    %20 = arith.subf %3, %19 : vector<16x64xf32>
    %cst_11 = arith.constant 9.99999974E-6 : f32
    %21 = vector.broadcast %cst_11 : f32 to vector<16x1xf32>
    %22 = arith.addf %18, %21 : vector<16x1xf32>
    %23 = math.rsqrt %22 : vector<16x1xf32>
    %24 = vector.broadcast %23 : vector<16x1xf32> to vector<16x64xf32>
    %25 = arith.mulf %20, %24 : vector<16x64xf32>
    %26 = vector.broadcast %5 : vector<1x64xf32> to vector<16x64xf32>
    %27 = arith.mulf %25, %26 : vector<16x64xf32>
    %28 = vector.broadcast %7 : vector<1x64xf32> to vector<16x64xf32>
    %29 = arith.addf %27, %28 : vector<16x64xf32>
    %30 = arith.truncf %29 : vector<16x64xf32> to vector<16x64xbf16>
    %c0_12 = arith.constant 0 : index
    %c0_13 = arith.constant 0 : index
    %c0_14 = arith.constant 0 : index
    %31 = vector.load %arg5[%c0_12, %c0_13, %c0_14] : memref<1x64x192xbf16, #tpu.memory_space<vmem>>, vector<1x64x192xbf16>
    %32 = vector.shape_cast %31 : vector<1x64x192xbf16> to vector<64x192xbf16>
    %cst_15 = arith.constant dense<0.000000e+00> : vector<16x192xf32>
    %33 = tpu.matmul %30, %32, %cst_15 {dimension_numbers = #tpu.dot_dimension_numbers<[1], [0], [0], [1], [0, 0, 1, 1], [], []>} : vector<16x64xbf16>, vector<64x192xbf16>, vector<16x192xf32> -> vector<16x192xf32>
    %c0_16 = arith.constant 0 : index
    %c0_17 = arith.constant 0 : index
    %c0_18 = arith.constant 0 : index
    %34 = vector.load %arg6[%c0_16, %c0_17, %c0_18] : memref<1x1x192xf32, #tpu.memory_space<vmem>>, vector<1x1x192xf32>
    %35 = vector.shape_cast %34 : vector<1x1x192xf32> to vector<1x192xf32>
    %36 = vector.broadcast %35 : vector<1x192xf32> to vector<16x192xf32>
    %37 = arith.addf %33, %36 : vector<16x192xf32>
    %38 = vector.extract_strided_slice %37 {offsets = [0, 0], sizes = [16, 16], strides = [1, 1]} : vector<16x192xf32> to vector<16x16xf32>
    %39 = vector.extract_strided_slice %37 {offsets = [0, 16], sizes = [16, 16], strides = [1, 1]} : vector<16x192xf32> to vector<16x16xf32>
    %40 = vector.extract_strided_slice %37 {offsets = [0, 32], sizes = [16, 16], strides = [1, 1]} : vector<16x192xf32> to vector<16x16xf32>
    %41 = vector.extract_strided_slice %37 {offsets = [0, 48], sizes = [16, 16], strides = [1, 1]} : vector<16x192xf32> to vector<16x16xf32>
    %42 = vector.shape_cast %38 : vector<16x16xf32> to vector<1x16x16xf32>
    %43 = vector.shape_cast %39 : vector<16x16xf32> to vector<1x16x16xf32>
    %44 = vector.shape_cast %40 : vector<16x16xf32> to vector<1x16x16xf32>
    %45 = vector.shape_cast %41 : vector<16x16xf32> to vector<1x16x16xf32>
    %46 = tpu.concatenate %42, %43, %44, %45 in 0 : vector<1x16x16xf32>, vector<1x16x16xf32>, vector<1x16x16xf32>, vector<1x16x16xf32> -> vector<4x16x16xf32>
    %cst_19 = arith.constant 2.500000e-01 : f32
    %47 = vector.broadcast %cst_19 : f32 to vector<4x16x16xf32>
    %48 = arith.mulf %46, %47 : vector<4x16x16xf32>
    %49 = vector.extract_strided_slice %37 {offsets = [0, 64], sizes = [16, 16], strides = [1, 1]} : vector<16x192xf32> to vector<16x16xf32>
    %50 = vector.extract_strided_slice %37 {offsets = [0, 80], sizes = [16, 16], strides = [1, 1]} : vector<16x192xf32> to vector<16x16xf32>
    %51 = vector.extract_strided_slice %37 {offsets = [0, 96], sizes = [16, 16], strides = [1, 1]} : vector<16x192xf32> to vector<16x16xf32>
    %52 = vector.extract_strided_slice %37 {offsets = [0, 112], sizes = [16, 16], strides = [1, 1]} : vector<16x192xf32> to vector<16x16xf32>
    %53 = vector.shape_cast %49 : vector<16x16xf32> to vector<1x16x16xf32>
    %54 = vector.shape_cast %50 : vector<16x16xf32> to vector<1x16x16xf32>
    %55 = vector.shape_cast %51 : vector<16x16xf32> to vector<1x16x16xf32>
    %56 = vector.shape_cast %52 : vector<16x16xf32> to vector<1x16x16xf32>
    %57 = tpu.concatenate %53, %54, %55, %56 in 0 : vector<1x16x16xf32>, vector<1x16x16xf32>, vector<1x16x16xf32>, vector<1x16x16xf32> -> vector<4x16x16xf32>
    %58 = vector.extract_strided_slice %37 {offsets = [0, 128], sizes = [16, 16], strides = [1, 1]} : vector<16x192xf32> to vector<16x16xf32>
    %59 = vector.extract_strided_slice %37 {offsets = [0, 144], sizes = [16, 16], strides = [1, 1]} : vector<16x192xf32> to vector<16x16xf32>
    %60 = vector.extract_strided_slice %37 {offsets = [0, 160], sizes = [16, 16], strides = [1, 1]} : vector<16x192xf32> to vector<16x16xf32>
    %61 = vector.extract_strided_slice %37 {offsets = [0, 176], sizes = [16, 16], strides = [1, 1]} : vector<16x192xf32> to vector<16x16xf32>
    %62 = vector.shape_cast %58 : vector<16x16xf32> to vector<1x16x16xf32>
    %63 = vector.shape_cast %59 : vector<16x16xf32> to vector<1x16x16xf32>
    %64 = vector.shape_cast %60 : vector<16x16xf32> to vector<1x16x16xf32>
    %65 = vector.shape_cast %61 : vector<16x16xf32> to vector<1x16x16xf32>
    %66 = tpu.concatenate %62, %63, %64, %65 in 0 : vector<1x16x16xf32>, vector<1x16x16xf32>, vector<1x16x16xf32>, vector<1x16x16xf32> -> vector<4x16x16xf32>
    %67 = arith.truncf %48 : vector<4x16x16xf32> to vector<4x16x16xbf16>
    %68 = arith.truncf %57 : vector<4x16x16xf32> to vector<4x16x16xbf16>
    "tpu.trace_start"() <{level = 10 : i32, message = "hqd,hkd->hqk"}> : () -> ()
    %cst_20 = arith.constant dense<0.000000e+00> : vector<4x16x16xf32>
    %69 = tpu.matmul %67, %68, %cst_20 {dimension_numbers = #tpu.dot_dimension_numbers<[2], [2], [1], [1], [0, 0, 0, 1, 1, 1], [0], [0]>} : vector<4x16x16xbf16>, vector<4x16x16xbf16>, vector<4x16x16xf32> -> vector<4x16x16xf32>
    "tpu.trace_stop"() : () -> ()
    %70 = tpu.iota {dimensions = array<i32: 1>} : vector<1x16x16xi32>
    %71 = tpu.iota {dimensions = array<i32: 2>} : vector<1x16x16xi32>
    %72 = arith.cmpi sle, %71, %70 : vector<1x16x16xi32>
    %cst_21 = arith.constant -1.000000e+04 : f32
    %73 = vector.shape_cast %72 : vector<1x16x16xi1> to vector<1x16x16xi1>
    %74 = vector.broadcast %73 : vector<1x16x16xi1> to vector<4x16x16xi1>
    %75 = vector.broadcast %cst_21 : f32 to vector<4x16x16xf32>
    %76 = arith.select %74, %69, %75 : vector<4x16x16xi1>, vector<4x16x16xf32>
    %cst_22 = arith.constant dense<0xFF800000> : vector<4x16xf32>
    %77 = vector.multi_reduction <maximumf>, %76, %cst_22 [2] : vector<4x16x16xf32> to vector<4x16xf32>
    %78 = vector.shape_cast %77 : vector<4x16xf32> to vector<4x16x1xf32>
    %79 = vector.broadcast %78 : vector<4x16x1xf32> to vector<4x16x16xf32>
    %80 = arith.subf %76, %79 : vector<4x16x16xf32>
    %81 = math.exp %80 : vector<4x16x16xf32>
    %cst_23 = arith.constant dense<0.000000e+00> : vector<4x16xf32>
    %82 = vector.multi_reduction <add>, %81, %cst_23 [2] : vector<4x16x16xf32> to vector<4x16xf32>
    %83 = vector.shape_cast %82 : vector<4x16xf32> to vector<4x16x1xf32>
    %84 = tpu.reciprocal %83 {approx = true} : vector<4x16x1xf32> -> vector<4x16x1xf32>
    %85 = vector.broadcast %84 : vector<4x16x1xf32> to vector<4x16x16xf32>
    %86 = arith.mulf %81, %85 : vector<4x16x16xf32>
    %87 = arith.truncf %86 : vector<4x16x16xf32> to vector<4x16x16xbf16>
    %88 = arith.truncf %66 : vector<4x16x16xf32> to vector<4x16x16xbf16>
    "tpu.trace_start"() <{level = 10 : i32, message = "hqk,hkd->hqd"}> : () -> ()
    %cst_24 = arith.constant dense<0.000000e+00> : vector<4x16x16xf32>
    %89 = tpu.matmul %87, %88, %cst_24 {dimension_numbers = #tpu.dot_dimension_numbers<[2], [1], [1], [2], [0, 0, 0, 1, 1, 2], [0], [0]>} : vector<4x16x16xbf16>, vector<4x16x16xbf16>, vector<4x16x16xf32> -> vector<4x16x16xf32>
    "tpu.trace_stop"() : () -> ()
    %90 = vector.extract_strided_slice %89 {offsets = [0, 0, 0], sizes = [1, 16, 16], strides = [1, 1, 1]} : vector<4x16x16xf32> to vector<1x16x16xf32>
    %91 = vector.shape_cast %90 : vector<1x16x16xf32> to vector<16x16xf32>
    %92 = vector.extract_strided_slice %89 {offsets = [1, 0, 0], sizes = [1, 16, 16], strides = [1, 1, 1]} : vector<4x16x16xf32> to vector<1x16x16xf32>
    %93 = vector.shape_cast %92 : vector<1x16x16xf32> to vector<16x16xf32>
    %94 = vector.extract_strided_slice %89 {offsets = [2, 0, 0], sizes = [1, 16, 16], strides = [1, 1, 1]} : vector<4x16x16xf32> to vector<1x16x16xf32>
    %95 = vector.shape_cast %94 : vector<1x16x16xf32> to vector<16x16xf32>
    %96 = vector.extract_strided_slice %89 {offsets = [3, 0, 0], sizes = [1, 16, 16], strides = [1, 1, 1]} : vector<4x16x16xf32> to vector<1x16x16xf32>
    %97 = vector.shape_cast %96 : vector<1x16x16xf32> to vector<16x16xf32>
    %98 = tpu.concatenate %91, %93, %95, %97 in 1 : vector<16x16xf32>, vector<16x16xf32>, vector<16x16xf32>, vector<16x16xf32> -> vector<16x64xf32>
    %99 = arith.truncf %98 : vector<16x64xf32> to vector<16x64xbf16>
    %c0_25 = arith.constant 0 : index
    %c0_26 = arith.constant 0 : index
    %c0_27 = arith.constant 0 : index
    %100 = vector.load %arg7[%c0_25, %c0_26, %c0_27] : memref<1x64x64xbf16, #tpu.memory_space<vmem>>, vector<1x64x64xbf16>
    %101 = vector.shape_cast %100 : vector<1x64x64xbf16> to vector<64x64xbf16>
    %cst_28 = arith.constant dense<0.000000e+00> : vector<16x64xf32>
    %102 = tpu.matmul %99, %101, %cst_28 {dimension_numbers = #tpu.dot_dimension_numbers<[1], [0], [0], [1], [0, 0, 1, 1], [], []>} : vector<16x64xbf16>, vector<64x64xbf16>, vector<16x64xf32> -> vector<16x64xf32>
    %c0_29 = arith.constant 0 : index
    %c0_30 = arith.constant 0 : index
    %c0_31 = arith.constant 0 : index
    %103 = vector.load %arg8[%c0_29, %c0_30, %c0_31] : memref<1x1x64xf32, #tpu.memory_space<vmem>>, vector<1x1x64xf32>
    %104 = vector.shape_cast %103 : vector<1x1x64xf32> to vector<1x64xf32>
    %105 = vector.broadcast %104 : vector<1x64xf32> to vector<16x64xf32>
    %106 = arith.addf %102, %105 : vector<16x64xf32>
    %107 = arith.addf %3, %106 : vector<16x64xf32>
    %c0_32 = arith.constant 0 : index
    %c0_33 = arith.constant 0 : index
    %c0_34 = arith.constant 0 : index
    %108 = vector.load %arg9[%c0_32, %c0_33, %c0_34] : memref<1x1x64xf32, #tpu.memory_space<vmem>>, vector<1x1x64xf32>
    %109 = vector.shape_cast %108 : vector<1x1x64xf32> to vector<1x64xf32>
    %c0_35 = arith.constant 0 : index
    %c0_36 = arith.constant 0 : index
    %c0_37 = arith.constant 0 : index
    %110 = vector.load %arg10[%c0_35, %c0_36, %c0_37] : memref<1x1x64xf32, #tpu.memory_space<vmem>>, vector<1x1x64xf32>
    %111 = vector.shape_cast %110 : vector<1x1x64xf32> to vector<1x64xf32>
    %cst_38 = arith.constant dense<0.000000e+00> : vector<16xf32>
    %112 = vector.multi_reduction <add>, %107, %cst_38 [1] : vector<16x64xf32> to vector<16xf32>
    %113 = vector.shape_cast %112 : vector<16xf32> to vector<16x1xf32>
    %cst_39 = arith.constant 6.400000e+01 : f32
    %114 = vector.broadcast %cst_39 : f32 to vector<16x1xf32>
    %115 = arith.divf %113, %114 : vector<16x1xf32>
    %116 = vector.broadcast %115 : vector<16x1xf32> to vector<16x64xf32>
    %117 = arith.subf %107, %116 : vector<16x64xf32>
    %118 = arith.mulf %117, %117 : vector<16x64xf32>
    %cst_40 = arith.constant dense<0.000000e+00> : vector<16xf32>
    %119 = vector.multi_reduction <add>, %118, %cst_40 [1] : vector<16x64xf32> to vector<16xf32>
    %120 = vector.shape_cast %119 : vector<16xf32> to vector<16x1xf32>
    %cst_41 = arith.constant 6.400000e+01 : f32
    %121 = vector.broadcast %cst_41 : f32 to vector<16x1xf32>
    %122 = arith.divf %120, %121 : vector<16x1xf32>
    %123 = vector.broadcast %115 : vector<16x1xf32> to vector<16x64xf32>
    %124 = arith.subf %107, %123 : vector<16x64xf32>
    %cst_42 = arith.constant 9.99999974E-6 : f32
    %125 = vector.broadcast %cst_42 : f32 to vector<16x1xf32>
    %126 = arith.addf %122, %125 : vector<16x1xf32>
    %127 = math.rsqrt %126 : vector<16x1xf32>
    %128 = vector.broadcast %127 : vector<16x1xf32> to vector<16x64xf32>
    %129 = arith.mulf %124, %128 : vector<16x64xf32>
    %130 = vector.broadcast %109 : vector<1x64xf32> to vector<16x64xf32>
    %131 = arith.mulf %129, %130 : vector<16x64xf32>
    %132 = vector.broadcast %111 : vector<1x64xf32> to vector<16x64xf32>
    %133 = arith.addf %131, %132 : vector<16x64xf32>
    %134 = arith.truncf %133 : vector<16x64xf32> to vector<16x64xbf16>
    %c0_43 = arith.constant 0 : index
    %c0_44 = arith.constant 0 : index
    %c0_45 = arith.constant 0 : index
    %135 = vector.load %arg11[%c0_43, %c0_44, %c0_45] : memref<1x64x256xbf16, #tpu.memory_space<vmem>>, vector<1x64x256xbf16>
    %136 = vector.shape_cast %135 : vector<1x64x256xbf16> to vector<64x256xbf16>
    %cst_46 = arith.constant dense<0.000000e+00> : vector<16x256xf32>
    %137 = tpu.matmul %134, %136, %cst_46 {dimension_numbers = #tpu.dot_dimension_numbers<[1], [0], [0], [1], [0, 0, 1, 1], [], []>} : vector<16x64xbf16>, vector<64x256xbf16>, vector<16x256xf32> -> vector<16x256xf32>
    %c0_47 = arith.constant 0 : index
    %c0_48 = arith.constant 0 : index
    %c0_49 = arith.constant 0 : index
    %138 = vector.load %arg12[%c0_47, %c0_48, %c0_49] : memref<1x1x256xf32, #tpu.memory_space<vmem>>, vector<1x1x256xf32>
    %139 = vector.shape_cast %138 : vector<1x1x256xf32> to vector<1x256xf32>
    %140 = vector.broadcast %139 : vector<1x256xf32> to vector<16x256xf32>
    %141 = arith.addf %137, %140 : vector<16x256xf32>
    %cst_50 = arith.constant 0.636619746 : f32
    %142 = math.sqrt %cst_50 : f32
    %cst_51 = arith.constant 5.000000e-01 : f32
    %143 = vector.broadcast %cst_51 : f32 to vector<16x256xf32>
    %144 = arith.mulf %143, %141 : vector<16x256xf32>
    %cst_52 = arith.constant 4.471500e-02 : f32
    %145 = vector.broadcast %cst_52 : f32 to vector<16x256xf32>
    %146 = arith.mulf %145, %141 : vector<16x256xf32>
    %147 = arith.mulf %146, %141 : vector<16x256xf32>
    %148 = arith.mulf %147, %141 : vector<16x256xf32>
    %149 = arith.addf %141, %148 : vector<16x256xf32>
    %150 = vector.broadcast %142 : f32 to vector<16x256xf32>
    %151 = arith.mulf %150, %149 : vector<16x256xf32>
    %152 = math.tanh %151 : vector<16x256xf32>
    %cst_53 = arith.constant 1.000000e+00 : f32
    %153 = vector.broadcast %cst_53 : f32 to vector<16x256xf32>
    %154 = arith.addf %153, %152 : vector<16x256xf32>
    %155 = arith.mulf %144, %154 : vector<16x256xf32>
    %156 = arith.truncf %155 : vector<16x256xf32> to vector<16x256xbf16>
    %c0_54 = arith.constant 0 : index
    %c0_55 = arith.constant 0 : index
    %c0_56 = arith.constant 0 : index
    %157 = vector.load %arg13[%c0_54, %c0_55, %c0_56] : memref<1x256x64xbf16, #tpu.memory_space<vmem>>, vector<1x256x64xbf16>
    %158 = vector.shape_cast %157 : vector<1x256x64xbf16> to vector<256x64xbf16>
    %cst_57 = arith.constant dense<0.000000e+00> : vector<16x64xf32>
    %159 = tpu.matmul %156, %158, %cst_57 {dimension_numbers = #tpu.dot_dimension_numbers<[1], [0], [0], [1], [0, 0, 1, 1], [], []>} : vector<16x256xbf16>, vector<256x64xbf16>, vector<16x64xf32> -> vector<16x64xf32>
    %c0_58 = arith.constant 0 : index
    %c0_59 = arith.constant 0 : index
    %c0_60 = arith.constant 0 : index
    %160 = vector.load %arg14[%c0_58, %c0_59, %c0_60] : memref<1x1x64xf32, #tpu.memory_space<vmem>>, vector<1x1x64xf32>
    %161 = vector.shape_cast %160 : vector<1x1x64xf32> to vector<1x64xf32>
    %162 = vector.broadcast %161 : vector<1x64xf32> to vector<16x64xf32>
    %163 = arith.addf %159, %162 : vector<16x64xf32>
    %164 = arith.addf %107, %163 : vector<16x64xf32>
    %c0_61 = arith.constant 0 : index
    %c0_62 = arith.constant 0 : index
    %165 = vector.load %arg16[%c0_61, %c0_62] : memref<16x64xf32, #tpu.memory_space<vmem>>, vector<16x64xf32>
    tpu.vector_store %arg16[%c0_61, %c0_62], %164 {strides = array<i32>} : memref<16x64xf32, #tpu.memory_space<vmem>>, vector<16x64xf32>,
    %c1_i32 = arith.constant 1 : i32
    %166 = arith.cmpi eq, %arg1, %c1_i32 : i32
    %167 = arith.extui %166 : i1 to i32
    %c0_i32_63 = arith.constant 0 : i32
    %168 = arith.cmpi ne, %167, %c0_i32_63 : i32
    scf.if %168 {
      %c0_64 = arith.constant 0 : index
      %c0_65 = arith.constant 0 : index
      %c0_66 = arith.constant 0 : index
      %169 = vector.load %arg15[%c0_64, %c0_65, %c0_66] : memref<1x16x64xf32, #tpu.memory_space<vmem>>, vector<1x16x64xf32>
      %170 = vector.shape_cast %169 : vector<1x16x64xf32> to vector<16x64xf32>
      %171 = vector.shape_cast %164 : vector<16x64xf32> to vector<1x16x64xf32>
      tpu.vector_store %arg15[%c0_64, %c0_65, %c0_66], %171 {strides = array<i32>} : memref<1x16x64xf32, #tpu.memory_space<vmem>>, vector<1x16x64xf32>,
    } else {
    }
    return
  }
  func.func @transform_0(%arg0: i32, %arg1: i32) -> (i32, i32, i32) {
    %c0_i32 = arith.constant 0 : i32
    %c0_i32_0 = arith.constant 0 : i32
    %c0_i32_1 = arith.constant 0 : i32
    return %arg0, %c0_i32, %c0_i32_0 : i32, i32, i32
  }
  func.func @transform_1(%arg0: i32, %arg1: i32) -> (i32, i32, i32) {
    %c0_i32 = arith.constant 0 : i32
    %c0_i32_0 = arith.constant 0 : i32
    %c0_i32_1 = arith.constant 0 : i32
    return %arg1, %c0_i32, %c0_i32_0 : i32, i32, i32
  }
  func.func @transform_2(%arg0: i32, %arg1: i32) -> (i32, i32, i32) {
    %c0_i32 = arith.constant 0 : i32
    %c0_i32_0 = arith.constant 0 : i32
    %c0_i32_1 = arith.constant 0 : i32
    return %arg1, %c0_i32, %c0_i32_0 : i32, i32, i32
  }
  func.func @transform_3(%arg0: i32, %arg1: i32) -> (i32, i32, i32) {
    %c0_i32 = arith.constant 0 : i32
    %c0_i32_0 = arith.constant 0 : i32
    %c0_i32_1 = arith.constant 0 : i32
    return %arg1, %c0_i32, %c0_i32_0 : i32, i32, i32
  }
  func.func @transform_4(%arg0: i32, %arg1: i32) -> (i32, i32, i32) {
    %c0_i32 = arith.constant 0 : i32
    %c0_i32_0 = arith.constant 0 : i32
    %c0_i32_1 = arith.constant 0 : i32
    return %arg1, %c0_i32, %c0_i32_0 : i32, i32, i32
  }
  func.func @transform_5(%arg0: i32, %arg1: i32) -> (i32, i32, i32) {
    %c0_i32 = arith.constant 0 : i32
    %c0_i32_0 = arith.constant 0 : i32
    %c0_i32_1 = arith.constant 0 : i32
    return %arg1, %c0_i32, %c0_i32_0 : i32, i32, i32
  }
  func.func @transform_6(%arg0: i32, %arg1: i32) -> (i32, i32, i32) {
    %c0_i32 = arith.constant 0 : i32
    %c0_i32_0 = arith.constant 0 : i32
    %c0_i32_1 = arith.constant 0 : i32
    return %arg1, %c0_i32, %c0_i32_0 : i32, i32, i32
  }
  func.func @transform_7(%arg0: i32, %arg1: i32) -> (i32, i32, i32) {
    %c0_i32 = arith.constant 0 : i32
    %c0_i32_0 = arith.constant 0 : i32
    %c0_i32_1 = arith.constant 0 : i32
    return %arg1, %c0_i32, %c0_i32_0 : i32, i32, i32
  }
  func.func @transform_8(%arg0: i32, %arg1: i32) -> (i32, i32, i32) {
    %c0_i32 = arith.constant 0 : i32
    %c0_i32_0 = arith.constant 0 : i32
    %c0_i32_1 = arith.constant 0 : i32
    return %arg1, %c0_i32, %c0_i32_0 : i32, i32, i32
  }
  func.func @transform_9(%arg0: i32, %arg1: i32) -> (i32, i32, i32) {
    %c0_i32 = arith.constant 0 : i32
    %c0_i32_0 = arith.constant 0 : i32
    %c0_i32_1 = arith.constant 0 : i32
    return %arg1, %c0_i32, %c0_i32_0 : i32, i32, i32
  }
  func.func @transform_10(%arg0: i32, %arg1: i32) -> (i32, i32, i32) {
    %c0_i32 = arith.constant 0 : i32
    %c0_i32_0 = arith.constant 0 : i32
    %c0_i32_1 = arith.constant 0 : i32
    return %arg1, %c0_i32, %c0_i32_0 : i32, i32, i32
  }
  func.func @transform_11(%arg0: i32, %arg1: i32) -> (i32, i32, i32) {
    %c0_i32 = arith.constant 0 : i32
    %c0_i32_0 = arith.constant 0 : i32
    %c0_i32_1 = arith.constant 0 : i32
    return %arg1, %c0_i32, %c0_i32_0 : i32, i32, i32
  }
  func.func @transform_12(%arg0: i32, %arg1: i32) -> (i32, i32, i32) {
    %c0_i32 = arith.constant 0 : i32
    %c0_i32_0 = arith.constant 0 : i32
    %c0_i32_1 = arith.constant 0 : i32
    return %arg1, %c0_i32, %c0_i32_0 : i32, i32, i32
  }
  func.func @transform_13(%arg0: i32, %arg1: i32) -> (i32, i32, i32) {
    %c0_i32 = arith.constant 0 : i32
    %c0_i32_0 = arith.constant 0 : i32
    %c0_i32_1 = arith.constant 0 : i32
    return %arg0, %c0_i32, %c0_i32_0 : i32, i32, i32
  }
}

</mosaic_0001>

<llo_original>
// kernel: tpu_custom_call.1
$region0: #{tpu_custom_call.1}
  #allocation0 [shape = 'u32[]', space=smem, size = 0x4, offset = 0x4, fixed_abs, tag = 'smem constant byte address 0x4 - core index']
  #allocation1 [shape = 'u32[144,128]{1,0:T(1,128)}', space=vmem, size = 0x12000, scoped, tag = 'internal scratch']
  #allocation2 [shape = 'f32[16,64]{1,0:T(8,128)}', space=vmem, size = 0x2000, scoped, tag = 'scratch operand']
  %s0 = inlined_call_operand.vmem [shape: f32[2,16,64], index: 0, kind: input, shape index: {}]
  %s1 = inlined_call_operand.vmem [shape: f32[2,1,64], index: 1, kind: input, shape index: {}]
  %s2 = inlined_call_operand.vmem [shape: f32[2,1,64], index: 2, kind: input, shape index: {}]
  %s3 = inlined_call_operand.vmem [shape: bf16[2,64,192], index: 3, kind: input, shape index: {}]
  %s4 = inlined_call_operand.vmem [shape: f32[2,1,192], index: 4, kind: input, shape index: {}]
  %s5 = inlined_call_operand.vmem [shape: bf16[2,64,64], index: 5, kind: input, shape index: {}]
  %s6 = inlined_call_operand.vmem [shape: f32[2,1,64], index: 6, kind: input, shape index: {}]
  %s7 = inlined_call_operand.vmem [shape: f32[2,1,64], index: 7, kind: input, shape index: {}]
  %s8 = inlined_call_operand.vmem [shape: f32[2,1,64], index: 8, kind: input, shape index: {}]
  %s9 = inlined_call_operand.vmem [shape: bf16[2,64,256], index: 9, kind: input, shape index: {}]
  %s10 = inlined_call_operand.vmem [shape: f32[2,1,256], index: 10, kind: input, shape index: {}]
  %s11 = inlined_call_operand.vmem [shape: bf16[2,256,64], index: 11, kind: input, shape index: {}]
  %s12 = inlined_call_operand.vmem [shape: f32[2,1,64], index: 12, kind: input, shape index: {}]
  %s13 = inlined_call_operand.hbm [shape: f32[2,16,64], index: 13, kind: output, shape index: {}]
  %s14 = sld [smem:[#allocation0]]
  $region93: #{tpu_custom_call.1} parent=0
    _
  %s16 = ssub.s32 1, %s14
  %s17 = scalar_select 0, %s16, %s14
  $region1: #{tpu_custom_call.1} parent=0
    #allocation3 [shape = 'u8[16384]{0}', space=vmem, size = 0x4000, scoped, tag = 'output window, operand 0']
    #allocation4 [shape = 's32[2]{0}', space=sflag, size = 0x8, scoped, tag = 'scoped memory for tpu_custom_call.1']
    %18 = vsyncpa [#allocation4], 0
    %s19 = scalar_lea.sflag [#allocation4], 1
    %20 = vsyncpa %s19, 0
    loop: start=0, step=1, limit=6
    $region2: #{tpu_custom_call.1} parent=1 // loop_pre_header
      _
    $region3: #{tpu_custom_call.1} parent=1 // loop_header
      %s22 = sphi 0, %s26
      %p23 = scmp.ge.s32.totalorder %s22, 6
      %s29 = sphi 0, %s41
      %s30 = sphi 0, %s37
      %s31 = sphi 0, %s29
      %s32 = sphi 0, %s30
      %s33 = sphi 0, %s31
      %s34 = sphi 0, %s32
      %s44 = sphi 0, %s46
      %s47 = sphi 0, %s44
      %s48 = sphi 0, %s47
      %s64 = sphi 0, %s48
      %s70 = sphi 0, %s72
      %s73 = sphi 0, %s70
      %s74 = sphi 0, %s73
      %s90 = sphi 0, %s74
      %s96 = sphi 0, %s98
      %s99 = sphi 0, %s96
      %s100 = sphi 0, %s99
      %s116 = sphi 0, %s100
      %s122 = sphi 0, %s124
      %s125 = sphi 0, %s122
      %s126 = sphi 0, %s125
      %s142 = sphi 0, %s126
      %s148 = sphi 0, %s150
      %s151 = sphi 0, %s148
      %s152 = sphi 0, %s151
      %s168 = sphi 0, %s152
      %s174 = sphi 0, %s176
      %s177 = sphi 0, %s174
      %s178 = sphi 0, %s177
      %s194 = sphi 0, %s178
      %s200 = sphi 0, %s202
      %s203 = sphi 0, %s200
      %s204 = sphi 0, %s203
      %s220 = sphi 0, %s204
      %s226 = sphi 0, %s228
      %s229 = sphi 0, %s226
      %s230 = sphi 0, %s229
      %s246 = sphi 0, %s230
      %s252 = sphi 0, %s254
      %s255 = sphi 0, %s252
      %s256 = sphi 0, %s255
      %s272 = sphi 0, %s256
      %s278 = sphi 0, %s280
      %s281 = sphi 0, %s278
      %s282 = sphi 0, %s281
      %s298 = sphi 0, %s282
      %s304 = sphi 0, %s306
      %s307 = sphi 0, %s304
      %s308 = sphi 0, %s307
      %s324 = sphi 0, %s308
      %s330 = sphi 0, %s332
      %s333 = sphi 0, %s330
      %s334 = sphi 0, %s333
      %s350 = sphi 0, %s334
      %s356 = sphi 0, %s358
      %s359 = sphi 0, %s356
      %s360 = sphi 0, %s359
      %s376 = sphi 0, %s360
      %s382 = sphi 0, %s384
      %s385 = sphi 0, %s382
      %s386 = sphi 0, %s385
      %s402 = sphi 0, %s386
    $region4: #{tpu_custom_call.1} parent=1 // loop_header_branch
      %25 = sbr.rel (%p23) target = $region8
    $region5: #{tpu_custom_call.1} parent=1 // loop_body
      %s27 = ssub.s32 %s22, 1
      %s28 = ssub.s32 %s22, 2
      %s35 = sadd.s32 1, %s30
      %p36 = scmp.ge.s32.totalorder %s35, 2
      %s37 = scalar_select %p36, 0, %s35
      %s38 = sadd.s32 1, %s29
      %s39 = scalar_select %p36, %s38, %s29
      %p40 = scmp.ge.s32.totalorder %s39, 2
      %s41 = scalar_select %p40, 0, %s39
      %s42 = ssub.s32 %s29, %s41
      %p43 = scmp.eq.s32.totalorder %s42, 0
      %s45 = sadd.s32 %s44, 1
      %s46 = scalar_select %p43, %s44, %s45
      %p49 = pneg %p43
      %p50 = scmp.eq.s32.totalorder %s22, 3
      %p51 = por %p49, %p50
      %p52 = scmp.ne.s32.totalorder %s44, %s47
      %p53 = scmp.eq.s32.totalorder %s22, 0
      %p54 = por %p52, %p53
      %p55 = scmp.ne.s32.totalorder %s44, %s47
      %p56 = scmp.eq.s32.totalorder %s27, 3
      %p57 = por %p55, %p56
      %p58 = scmp.ne.s32.totalorder %s47, %s48
      %p59 = scmp.eq.s32.totalorder %s27, 0
      %p60 = por %p58, %p59
      %p61 = scmp.ne.s32.totalorder %s47, %s48
      %p62 = scmp.eq.s32.totalorder %s28, 3
      %p63 = por %p61, %p62
      %p65 = scmp.ne.s32.totalorder %s48, %s64
      %p66 = scmp.eq.s32.totalorder %s28, 0
      %p67 = por %p65, %p66
      %s68 = ssub.s32 %s30, %s37
      %p69 = scmp.eq.s32.totalorder %s68, 0
      %s71 = sadd.s32 %s70, 1
      %s72 = scalar_select %p69, %s70, %s71
      %p75 = pneg %p69
      %p76 = scmp.eq.s32.totalorder %s22, 3
      %p77 = por %p75, %p76
      %p78 = scmp.ne.s32.totalorder %s70, %s73
      %p79 = scmp.eq.s32.totalorder %s22, 0
      %p80 = por %p78, %p79
      %p81 = scmp.ne.s32.totalorder %s70, %s73
      %p82 = scmp.eq.s32.totalorder %s27, 3
      %p83 = por %p81, %p82
      %p84 = scmp.ne.s32.totalorder %s73, %s74
      %p85 = scmp.eq.s32.totalorder %s27, 0
      %p86 = por %p84, %p85
      %p87 = scmp.ne.s32.totalorder %s73, %s74
      %p88 = scmp.eq.s32.totalorder %s28, 3
      %p89 = por %p87, %p88
      %p91 = scmp.ne.s32.totalorder %s74, %s90
      %p92 = scmp.eq.s32.totalorder %s28, 0
      %p93 = por %p91, %p92
      %s94 = ssub.s32 %s30, %s37
      %p95 = scmp.eq.s32.totalorder %s94, 0
      %s97 = sadd.s32 %s96, 1
      %s98 = scalar_select %p95, %s96, %s97
      %p101 = pneg %p95
      %p102 = scmp.eq.s32.totalorder %s22, 3
      %p103 = por %p101, %p102
      %p104 = scmp.ne.s32.totalorder %s96, %s99
      %p105 = scmp.eq.s32.totalorder %s22, 0
      %p106 = por %p104, %p105
      %p107 = scmp.ne.s32.totalorder %s96, %s99
      %p108 = scmp.eq.s32.totalorder %s27, 3
      %p109 = por %p107, %p108
      %p110 = scmp.ne.s32.totalorder %s99, %s100
      %p111 = scmp.eq.s32.totalorder %s27, 0
      %p112 = por %p110, %p111
      %p113 = scmp.ne.s32.totalorder %s99, %s100
      %p114 = scmp.eq.s32.totalorder %s28, 3
      %p115 = por %p113, %p114
      %p117 = scmp.ne.s32.totalorder %s100, %s116
      %p118 = scmp.eq.s32.totalorder %s28, 0
      %p119 = por %p117, %p118
      %s120 = ssub.s32 %s30, %s37
      %p121 = scmp.eq.s32.totalorder %s120, 0
      %s123 = sadd.s32 %s122, 1
      %s124 = scalar_select %p121, %s122, %s123
      %p127 = pneg %p121
      %p128 = scmp.eq.s32.totalorder %s22, 3
      %p129 = por %p127, %p128
      %p130 = scmp.ne.s32.totalorder %s122, %s125
      %p131 = scmp.eq.s32.totalorder %s22, 0
      %p132 = por %p130, %p131
      %p133 = scmp.ne.s32.totalorder %s122, %s125
      %p134 = scmp.eq.s32.totalorder %s27, 3
      %p135 = por %p133, %p134
      %p136 = scmp.ne.s32.totalorder %s125, %s126
      %p137 = scmp.eq.s32.totalorder %s27, 0
      %p138 = por %p136, %p137
      %p139 = scmp.ne.s32.totalorder %s125, %s126
      %p140 = scmp.eq.s32.totalorder %s28, 3
      %p141 = por %p139, %p140
      %p143 = scmp.ne.s32.totalorder %s126, %s142
      %p144 = scmp.eq.s32.totalorder %s28, 0
      %p145 = por %p143, %p144
      %s146 = ssub.s32 %s30, %s37
      %p147 = scmp.eq.s32.totalorder %s146, 0
      %s149 = sadd.s32 %s148, 1
      %s150 = scalar_select %p147, %s148, %s149
      %p153 = pneg %p147
      %p154 = scmp.eq.s32.totalorder %s22, 3
      %p155 = por %p153, %p154
      %p156 = scmp.ne.s32.totalorder %s148, %s151
      %p157 = scmp.eq.s32.totalorder %s22, 0
      %p158 = por %p156, %p157
      %p159 = scmp.ne.s32.totalorder %s148, %s151
      %p160 = scmp.eq.s32.totalorder %s27, 3
      %p161 = por %p159, %p160
      %p162 = scmp.ne.s32.totalorder %s151, %s152
      %p163 = scmp.eq.s32.totalorder %s27, 0
      %p164 = por %p162, %p163
      %p165 = scmp.ne.s32.totalorder %s151, %s152
      %p166 = scmp.eq.s32.totalorder %s28, 3
      %p167 = por %p165, %p166
      %p169 = scmp.ne.s32.totalorder %s152, %s168
      %p170 = scmp.eq.s32.totalorder %s28, 0
      %p171 = por %p169, %p170
      %s172 = ssub.s32 %s30, %s37
      %p173 = scmp.eq.s32.totalorder %s172, 0
      %s175 = sadd.s32 %s174, 1
      %s176 = scalar_select %p173, %s174, %s175
      %p179 = pneg %p173
      %p180 = scmp.eq.s32.totalorder %s22, 3
      %p181 = por %p179, %p180
      %p182 = scmp.ne.s32.totalorder %s174, %s177
      %p183 = scmp.eq.s32.totalorder %s22, 0
      %p184 = por %p182, %p183
      %p185 = scmp.ne.s32.totalorder %s174, %s177
      %p186 = scmp.eq.s32.totalorder %s27, 3
      %p187 = por %p185, %p186
      %p188 = scmp.ne.s32.totalorder %s177, %s178
      %p189 = scmp.eq.s32.totalorder %s27, 0
      %p190 = por %p188, %p189
      %p191 = scmp.ne.s32.totalorder %s177, %s178
      %p192 = scmp.eq.s32.totalorder %s28, 3
      %p193 = por %p191, %p192
      %p195 = scmp.ne.s32.totalorder %s178, %s194
      %p196 = scmp.eq.s32.totalorder %s28, 0
      %p197 = por %p195, %p196
      %s198 = ssub.s32 %s30, %s37
      %p199 = scmp.eq.s32.totalorder %s198, 0
      %s201 = sadd.s32 %s200, 1
      %s202 = scalar_select %p199, %s200, %s201
      %p205 = pneg %p199
      %p206 = scmp.eq.s32.totalorder %s22, 3
      %p207 = por %p205, %p206
      %p208 = scmp.ne.s32.totalorder %s200, %s203
      %p209 = scmp.eq.s32.totalorder %s22, 0
      %p210 = por %p208, %p209
      %p211 = scmp.ne.s32.totalorder %s200, %s203
      %p212 = scmp.eq.s32.totalorder %s27, 3
      %p213 = por %p211, %p212
      %p214 = scmp.ne.s32.totalorder %s203, %s204
      %p215 = scmp.eq.s32.totalorder %s27, 0
      %p216 = por %p214, %p215
      %p217 = scmp.ne.s32.totalorder %s203, %s204
      %p218 = scmp.eq.s32.totalorder %s28, 3
      %p219 = por %p217, %p218
      %p221 = scmp.ne.s32.totalorder %s204, %s220
      %p222 = scmp.eq.s32.totalorder %s28, 0
      %p223 = por %p221, %p222
      %s224 = ssub.s32 %s30, %s37
      %p225 = scmp.eq.s32.totalorder %s224, 0
      %s227 = sadd.s32 %s226, 1
      %s228 = scalar_select %p225, %s226, %s227
      %p231 = pneg %p225
      %p232 = scmp.eq.s32.totalorder %s22, 3
      %p233 = por %p231, %p232
      %p234 = scmp.ne.s32.totalorder %s226, %s229
      %p235 = scmp.eq.s32.totalorder %s22, 0
      %p236 = por %p234, %p235
      %p237 = scmp.ne.s32.totalorder %s226, %s229
      %p238 = scmp.eq.s32.totalorder %s27, 3
      %p239 = por %p237, %p238
      %p240 = scmp.ne.s32.totalorder %s229, %s230
      %p241 = scmp.eq.s32.totalorder %s27, 0
      %p242 = por %p240, %p241
      %p243 = scmp.ne.s32.totalorder %s229, %s230
      %p244 = scmp.eq.s32.totalorder %s28, 3
      %p245 = por %p243, %p244
      %p247 = scmp.ne.s32.totalorder %s230, %s246
      %p248 = scmp.eq.s32.totalorder %s28, 0
      %p249 = por %p247, %p248
      %s250 = ssub.s32 %s30, %s37
      %p251 = scmp.eq.s32.totalorder %s250, 0
      %s253 = sadd.s32 %s252, 1
      %s254 = scalar_select %p251, %s252, %s253
      %p257 = pneg %p251
      %p258 = scmp.eq.s32.totalorder %s22, 3
      %p259 = por %p257, %p258
      %p260 = scmp.ne.s32.totalorder %s252, %s255
      %p261 = scmp.eq.s32.totalorder %s22, 0
      %p262 = por %p260, %p261
      %p263 = scmp.ne.s32.totalorder %s252, %s255
      %p264 = scmp.eq.s32.totalorder %s27, 3
      %p265 = por %p263, %p264
      %p266 = scmp.ne.s32.totalorder %s255, %s256
      %p267 = scmp.eq.s32.totalorder %s27, 0
      %p268 = por %p266, %p267
      %p269 = scmp.ne.s32.totalorder %s255, %s256
      %p270 = scmp.eq.s32.totalorder %s28, 3
      %p271 = por %p269, %p270
      %p273 = scmp.ne.s32.totalorder %s256, %s272
      %p274 = scmp.eq.s32.totalorder %s28, 0
      %p275 = por %p273, %p274
      %s276 = ssub.s32 %s30, %s37
      %p277 = scmp.eq.s32.totalorder %s276, 0
      %s279 = sadd.s32 %s278, 1
      %s280 = scalar_select %p277, %s278, %s279
      %p283 = pneg %p277
      %p284 = scmp.eq.s32.totalorder %s22, 3
      %p285 = por %p283, %p284
      %p286 = scmp.ne.s32.totalorder %s278, %s281
      %p287 = scmp.eq.s32.totalorder %s22, 0
      %p288 = por %p286, %p287
      %p289 = scmp.ne.s32.totalorder %s278, %s281
      %p290 = scmp.eq.s32.totalorder %s27, 3
      %p291 = por %p289, %p290
      %p292 = scmp.ne.s32.totalorder %s281, %s282
      %p293 = scmp.eq.s32.totalorder %s27, 0
      %p294 = por %p292, %p293
      %p295 = scmp.ne.s32.totalorder %s281, %s282
      %p296 = scmp.eq.s32.totalorder %s28, 3
      %p297 = por %p295, %p296
      %p299 = scmp.ne.s32.totalorder %s282, %s298
      %p300 = scmp.eq.s32.totalorder %s28, 0
      %p301 = por %p299, %p300
      %s302 = ssub.s32 %s30, %s37
      %p303 = scmp.eq.s32.totalorder %s302, 0
      %s305 = sadd.s32 %s304, 1
      %s306 = scalar_select %p303, %s304, %s305
      %p309 = pneg %p303
      %p310 = scmp.eq.s32.totalorder %s22, 3
      %p311 = por %p309, %p310
      %p312 = scmp.ne.s32.totalorder %s304, %s307
      %p313 = scmp.eq.s32.totalorder %s22, 0
      %p314 = por %p312, %p313
      %p315 = scmp.ne.s32.totalorder %s304, %s307
      %p316 = scmp.eq.s32.totalorder %s27, 3
      %p317 = por %p315, %p316
      %p318 = scmp.ne.s32.totalorder %s307, %s308
      %p319 = scmp.eq.s32.totalorder %s27, 0
      %p320 = por %p318, %p319
      %p321 = scmp.ne.s32.totalorder %s307, %s308
      %p322 = scmp.eq.s32.totalorder %s28, 3
      %p323 = por %p321, %p322
      %p325 = scmp.ne.s32.totalorder %s308, %s324
      %p326 = scmp.eq.s32.totalorder %s28, 0
      %p327 = por %p325, %p326
      %s328 = ssub.s32 %s30, %s37
      %p329 = scmp.eq.s32.totalorder %s328, 0
      %s331 = sadd.s32 %s330, 1
      %s332 = scalar_select %p329, %s330, %s331
      %p335 = pneg %p329
      %p336 = scmp.eq.s32.totalorder %s22, 3
      %p337 = por %p335, %p336
      %p338 = scmp.ne.s32.totalorder %s330, %s333
      %p339 = scmp.eq.s32.totalorder %s22, 0
      %p340 = por %p338, %p339
      %p341 = scmp.ne.s32.totalorder %s330, %s333
      %p342 = scmp.eq.s32.totalorder %s27, 3
      %p343 = por %p341, %p342
      %p344 = scmp.ne.s32.totalorder %s333, %s334
      %p345 = scmp.eq.s32.totalorder %s27, 0
      %p346 = por %p344, %p345
      %p347 = scmp.ne.s32.totalorder %s333, %s334
      %p348 = scmp.eq.s32.totalorder %s28, 3
      %p349 = por %p347, %p348
      %p351 = scmp.ne.s32.totalorder %s334, %s350
      %p352 = scmp.eq.s32.totalorder %s28, 0
      %p353 = por %p351, %p352
      %s354 = ssub.s32 %s30, %s37
      %p355 = scmp.eq.s32.totalorder %s354, 0
      %s357 = sadd.s32 %s356, 1
      %s358 = scalar_select %p355, %s356, %s357
      %p361 = pneg %p355
      %p362 = scmp.eq.s32.totalorder %s22, 3
      %p363 = por %p361, %p362
      %p364 = scmp.ne.s32.totalorder %s356, %s359
      %p365 = scmp.eq.s32.totalorder %s22, 0
      %p366 = por %p364, %p365
      %p367 = scmp.ne.s32.totalorder %s356, %s359
      %p368 = scmp.eq.s32.totalorder %s27, 3
      %p369 = por %p367, %p368
      %p370 = scmp.ne.s32.totalorder %s359, %s360
      %p371 = scmp.eq.s32.totalorder %s27, 0
      %p372 = por %p370, %p371
      %p373 = scmp.ne.s32.totalorder %s359, %s360
      %p374 = scmp.eq.s32.totalorder %s28, 3
      %p375 = por %p373, %p374
      %p377 = scmp.ne.s32.totalorder %s360, %s376
      %p378 = scmp.eq.s32.totalorder %s28, 0
      %p379 = por %p377, %p378
      %s380 = ssub.s32 %s29, %s41
      %p381 = scmp.eq.s32.totalorder %s380, 0
      %s383 = sadd.s32 %s382, 1
      %s384 = scalar_select %p381, %s382, %s383
      %p387 = pneg %p381
      %p388 = scmp.eq.s32.totalorder %s22, 3
      %p389 = por %p387, %p388
      %p390 = scmp.ne.s32.totalorder %s382, %s385
      %p391 = scmp.eq.s32.totalorder %s22, 0
      %p392 = por %p390, %p391
      %p393 = scmp.ne.s32.totalorder %s382, %s385
      %p394 = scmp.eq.s32.totalorder %s27, 3
      %p395 = por %p393, %p394
      %p396 = scmp.ne.s32.totalorder %s385, %s386
      %p397 = scmp.eq.s32.totalorder %s27, 0
      %p398 = por %p396, %p397
      %p399 = scmp.ne.s32.totalorder %s385, %s386
      %p400 = scmp.eq.s32.totalorder %s28, 3
      %p401 = por %p399, %p400
      %p403 = scmp.ne.s32.totalorder %s386, %s402
      %p404 = scmp.eq.s32.totalorder %s28, 0
      %p405 = por %p403, %p404
      %p406 = scmp.le.s32.totalorder 1, %s22
      %p407 = scmp.lt.s32.totalorder %s22, 5
      %p408 = pnand %p406, %p407
      %p409 = pneg %p408
      // Predicated region
      $region9: #{tpu_custom_call.1} parent=5 // pred_check
        _
      $region10: #{tpu_custom_call.1} parent=5 // pred_check_branch
        %411 = sbr.rel (%p408) target = $region12
      $region11: #{tpu_custom_call.1} parent=5 // pred_region
        %s412 = ssub.s32 %s22, 1
      $region12: #{tpu_custom_call.1} parent=5 // pred_fallthru
        _
      %p413 = scmp.lt.s32.totalorder %s22, 4
      // Predicated region
      $region13: #{tpu_custom_call.1} parent=5 // pred_check
        %p414 = pneg %p413
      $region14: #{tpu_custom_call.1} parent=5 // pred_check_branch
        %416 = sbr.rel (%p414) target = $region16
      $region15: #{tpu_custom_call.1} parent=5 // pred_region
        // Predicated region
        $region17: #{tpu_custom_call.1} parent=15 // pred_check
          %p417 = pneg %p54
        $region18: #{tpu_custom_call.1} parent=15 // pred_check_branch
          %419 = sbr.rel (%p417) target = $region20
        $region19: #{tpu_custom_call.1} parent=15 // pred_region
          %p420 = scmp.lt.s32.totalorder %s29, 1
          %s421 = scalar_select %p420, %s29, 1
          %s422 = smul.addr %s421, 2
          %s423 = smul.addr %s422, 8
          %s424 = scalar_lea.vmem %s0, %s423
        $region20: #{tpu_custom_call.1} parent=15 // pred_fallthru
          _
        // Predicated region
        $region21: #{tpu_custom_call.1} parent=15 // pred_check
          %p425 = pneg %p80
        $region22: #{tpu_custom_call.1} parent=15 // pred_check_branch
          %427 = sbr.rel (%p425) target = $region24
        $region23: #{tpu_custom_call.1} parent=15 // pred_region
          %p428 = scmp.lt.s32.totalorder %s30, 1
          %s429 = scalar_select %p428, %s30, 1
          %s430 = scalar_lea.vmem %s1, %s429
        $region24: #{tpu_custom_call.1} parent=15 // pred_fallthru
          _
        // Predicated region
        $region25: #{tpu_custom_call.1} parent=15 // pred_check
          %p431 = pneg %p106
        $region26: #{tpu_custom_call.1} parent=15 // pred_check_branch
          %433 = sbr.rel (%p431) target = $region28
        $region27: #{tpu_custom_call.1} parent=15 // pred_region
          %p434 = scmp.lt.s32.totalorder %s30, 1
          %s435 = scalar_select %p434, %s30, 1
          %s436 = scalar_lea.vmem %s2, %s435
        $region28: #{tpu_custom_call.1} parent=15 // pred_fallthru
          _
        // Predicated region
        $region29: #{tpu_custom_call.1} parent=15 // pred_check
          %p437 = pneg %p132
        $region30: #{tpu_custom_call.1} parent=15 // pred_check_branch
          %439 = sbr.rel (%p437) target = $region32
        $region31: #{tpu_custom_call.1} parent=15 // pred_region
          %p440 = scmp.lt.s32.totalorder %s30, 1
          %s441 = scalar_select %p440, %s30, 1
          %s442 = smul.addr %s441, 16
          %s443 = smul.addr %s442, 4
          %s444 = scalar_lea.vmem %s3, %s443
        $region32: #{tpu_custom_call.1} parent=15 // pred_fallthru
          _
        // Predicated region
        $region33: #{tpu_custom_call.1} parent=15 // pred_check
          %p445 = pneg %p158
        $region34: #{tpu_custom_call.1} parent=15 // pred_check_branch
          %447 = sbr.rel (%p445) target = $region36
        $region35: #{tpu_custom_call.1} parent=15 // pred_region
          %p448 = scmp.lt.s32.totalorder %s30, 1
          %s449 = scalar_select %p448, %s30, 1
          %s450 = smul.addr %s449, 2
          %s451 = scalar_lea.vmem %s4, %s450
        $region36: #{tpu_custom_call.1} parent=15 // pred_fallthru
          _
        // Predicated region
        $region37: #{tpu_custom_call.1} parent=15 // pred_check
          %p452 = pneg %p184
        $region38: #{tpu_custom_call.1} parent=15 // pred_check_branch
          %454 = sbr.rel (%p452) target = $region40
        $region39: #{tpu_custom_call.1} parent=15 // pred_region
          %p455 = scmp.lt.s32.totalorder %s30, 1
          %s456 = scalar_select %p455, %s30, 1
          %s457 = smul.addr %s456, 8
          %s458 = smul.addr %s457, 4
          %s459 = scalar_lea.vmem %s5, %s458
        $region40: #{tpu_custom_call.1} parent=15 // pred_fallthru
          _
        // Predicated region
        $region41: #{tpu_custom_call.1} parent=15 // pred_check
          %p460 = pneg %p210
        $region42: #{tpu_custom_call.1} parent=15 // pred_check_branch
          %462 = sbr.rel (%p460) target = $region44
        $region43: #{tpu_custom_call.1} parent=15 // pred_region
          %p463 = scmp.lt.s32.totalorder %s30, 1
          %s464 = scalar_select %p463, %s30, 1
          %s465 = scalar_lea.vmem %s6, %s464
        $region44: #{tpu_custom_call.1} parent=15 // pred_fallthru
          _
        // Predicated region
        $region45: #{tpu_custom_call.1} parent=15 // pred_check
          %p466 = pneg %p236
        $region46: #{tpu_custom_call.1} parent=15 // pred_check_branch
          %468 = sbr.rel (%p466) target = $region48
        $region47: #{tpu_custom_call.1} parent=15 // pred_region
          %p469 = scmp.lt.s32.totalorder %s30, 1
          %s470 = scalar_select %p469, %s30, 1
          %s471 = scalar_lea.vmem %s7, %s470
        $region48: #{tpu_custom_call.1} parent=15 // pred_fallthru
          _
        // Predicated region
        $region49: #{tpu_custom_call.1} parent=15 // pred_check
          %p472 = pneg %p262
        $region50: #{tpu_custom_call.1} parent=15 // pred_check_branch
          %474 = sbr.rel (%p472) target = $region52
        $region51: #{tpu_custom_call.1} parent=15 // pred_region
          %p475 = scmp.lt.s32.totalorder %s30, 1
          %s476 = scalar_select %p475, %s30, 1
          %s477 = scalar_lea.vmem %s8, %s476
        $region52: #{tpu_custom_call.1} parent=15 // pred_fallthru
          _
        // Predicated region
        $region53: #{tpu_custom_call.1} parent=15 // pred_check
          %p478 = pneg %p288
        $region54: #{tpu_custom_call.1} parent=15 // pred_check_branch
          %480 = sbr.rel (%p478) target = $region56
        $region55: #{tpu_custom_call.1} parent=15 // pred_region
          %p481 = scmp.lt.s32.totalorder %s30, 1
          %s482 = scalar_select %p481, %s30, 1
          %s483 = smul.addr %s482, 16
          %s484 = smul.addr %s483, 4
          %s485 = scalar_lea.vmem %s9, %s484
        $region56: #{tpu_custom_call.1} parent=15 // pred_fallthru
          _
        // Predicated region
        $region57: #{tpu_custom_call.1} parent=15 // pred_check
          %p486 = pneg %p314
        $region58: #{tpu_custom_call.1} parent=15 // pred_check_branch
          %488 = sbr.rel (%p486) target = $region60
        $region59: #{tpu_custom_call.1} parent=15 // pred_region
          %p489 = scmp.lt.s32.totalorder %s30, 1
          %s490 = scalar_select %p489, %s30, 1
          %s491 = smul.addr %s490, 2
          %s492 = scalar_lea.vmem %s10, %s491
        $region60: #{tpu_custom_call.1} parent=15 // pred_fallthru
          _
        // Predicated region
        $region61: #{tpu_custom_call.1} parent=15 // pred_check
          %p493 = pneg %p340
        $region62: #{tpu_custom_call.1} parent=15 // pred_check_branch
          %495 = sbr.rel (%p493) target = $region64
        $region63: #{tpu_custom_call.1} parent=15 // pred_region
          %p496 = scmp.lt.s32.totalorder %s30, 1
          %s497 = scalar_select %p496, %s30, 1
          %s498 = smul.addr %s497, 32
          %s499 = smul.addr %s498, 4
          %s500 = scalar_lea.vmem %s11, %s499
        $region64: #{tpu_custom_call.1} parent=15 // pred_fallthru
          _
        // Predicated region
        $region65: #{tpu_custom_call.1} parent=15 // pred_check
          %p501 = pneg %p366
        $region66: #{tpu_custom_call.1} parent=15 // pred_check_branch
          %503 = sbr.rel (%p501) target = $region68
        $region67: #{tpu_custom_call.1} parent=15 // pred_region
          %p504 = scmp.lt.s32.totalorder %s30, 1
          %s505 = scalar_select %p504, %s30, 1
          %s506 = scalar_lea.vmem %s12, %s505
        $region68: #{tpu_custom_call.1} parent=15 // pred_fallthru
          _
      $region16: #{tpu_custom_call.1} parent=5 // pred_fallthru
        _
      %p507 = scmp.le.s32.totalorder 1, %s22
      %p508 = scmp.lt.s32.totalorder %s22, 5
      %p509 = pnand %p507, %p508
      %p510 = pneg %p509
      // Predicated region
      $region69: #{tpu_custom_call.1} parent=5 // pred_check
        _
      $region70: #{tpu_custom_call.1} parent=5 // pred_check_branch
        %512 = sbr.rel (%p509) target = $region72
      $region71: #{tpu_custom_call.1} parent=5 // pred_region
        %s513 = ssub.s32 %s22, 1
        %p514 = scmp.lt.s32.totalorder %s31, 1
        %s515 = scalar_select %p514, %s31, 1
        %s516 = smul.addr %s515, 2
        %s517 = smul.addr %s516, 8
        %s518 = scalar_lea.vmem %s0, %s517
        %p519 = pneg %p60
        %p520 = pneg %p57
        %p521 = scmp.lt.s32.totalorder %s32, 1
        %s522 = scalar_select %p521, %s32, 1
        %s523 = scalar_lea.vmem %s1, %s522
        %p524 = pneg %p86
        %p525 = pneg %p83
        %p526 = scmp.lt.s32.totalorder %s32, 1
        %s527 = scalar_select %p526, %s32, 1
        %s528 = scalar_lea.vmem %s2, %s527
        %p529 = pneg %p112
        %p530 = pneg %p109
        %p531 = scmp.lt.s32.totalorder %s32, 1
        %s532 = scalar_select %p531, %s32, 1
        %s533 = smul.addr %s532, 16
        %s534 = smul.addr %s533, 4
        %s535 = scalar_lea.vmem %s3, %s534
        %p536 = pneg %p138
        %p537 = pneg %p135
        %p538 = scmp.lt.s32.totalorder %s32, 1
        %s539 = scalar_select %p538, %s32, 1
        %s540 = smul.addr %s539, 2
        %s541 = scalar_lea.vmem %s4, %s540
        %p542 = pneg %p164
        %p543 = pneg %p161
        %p544 = scmp.lt.s32.totalorder %s32, 1
        %s545 = scalar_select %p544, %s32, 1
        %s546 = smul.addr %s545, 8
        %s547 = smul.addr %s546, 4
        %s548 = scalar_lea.vmem %s5, %s547
        %p549 = pneg %p190
        %p550 = pneg %p187
        %p551 = scmp.lt.s32.totalorder %s32, 1
        %s552 = scalar_select %p551, %s32, 1
        %s553 = scalar_lea.vmem %s6, %s552
        %p554 = pneg %p216
        %p555 = pneg %p213
        %p556 = scmp.lt.s32.totalorder %s32, 1
        %s557 = scalar_select %p556, %s32, 1
        %s558 = scalar_lea.vmem %s7, %s557
        %p559 = pneg %p242
        %p560 = pneg %p239
        %p561 = scmp.lt.s32.totalorder %s32, 1
        %s562 = scalar_select %p561, %s32, 1
        %s563 = scalar_lea.vmem %s8, %s562
        %p564 = pneg %p268
        %p565 = pneg %p265
        %p566 = scmp.lt.s32.totalorder %s32, 1
        %s567 = scalar_select %p566, %s32, 1
        %s568 = smul.addr %s567, 16
        %s569 = smul.addr %s568, 4
        %s570 = scalar_lea.vmem %s9, %s569
        %p571 = pneg %p294
        %p572 = pneg %p291
        %p573 = scmp.lt.s32.totalorder %s32, 1
        %s574 = scalar_select %p573, %s32, 1
        %s575 = smul.addr %s574, 2
        %s576 = scalar_lea.vmem %s10, %s575
        %p577 = pneg %p320
        %p578 = pneg %p317
        %p579 = scmp.lt.s32.totalorder %s32, 1
        %s580 = scalar_select %p579, %s32, 1
        %s581 = smul.addr %s580, 32
        %s582 = smul.addr %s581, 4
        %s583 = scalar_lea.vmem %s11, %s582
        %p584 = pneg %p346
        %p585 = pneg %p343
        %p586 = scmp.lt.s32.totalorder %s32, 1
        %s587 = scalar_select %p586, %s32, 1
        %s588 = scalar_lea.vmem %s12, %s587
        %p589 = pneg %p372
        %p590 = pneg %p369
        %p591 = pneg %p398
        %p592 = pneg %p395
        %s593 = sand.u32 %s385, 1
        %s594 = scalar_lea.sflag [#allocation4], %s593
        %s595 = sand.u32 %s385, 1
        %s596 = smul.addr %s595, 16
        %s597 = scalar_lea.vmem [#allocation3], %s596
        %p598 = scmp.lt.s32.totalorder %s31, 1
        %s599 = scalar_select %p598, %s31, 1
        %s600 = smul.addr %s599, 2
        %s601 = smul.addr %s600, 8
        %s602 = scalar_lea.vmem %s0, %s601
        %p603 = scmp.lt.s32.totalorder %s32, 1
        %s604 = scalar_select %p603, %s32, 1
        %s605 = scalar_lea.vmem %s1, %s604
        %p606 = scmp.lt.s32.totalorder %s32, 1
        %s607 = scalar_select %p606, %s32, 1
        %s608 = scalar_lea.vmem %s2, %s607
        %p609 = scmp.lt.s32.totalorder %s32, 1
        %s610 = scalar_select %p609, %s32, 1
        %s611 = smul.addr %s610, 16
        %s612 = smul.addr %s611, 4
        %s613 = scalar_lea.vmem %s3, %s612
        %p614 = scmp.lt.s32.totalorder %s32, 1
        %s615 = scalar_select %p614, %s32, 1
        %s616 = smul.addr %s615, 2
        %s617 = scalar_lea.vmem %s4, %s616
        %p618 = scmp.lt.s32.totalorder %s32, 1
        %s619 = scalar_select %p618, %s32, 1
        %s620 = smul.addr %s619, 8
        %s621 = smul.addr %s620, 4
        %s622 = scalar_lea.vmem %s5, %s621
        %p623 = scmp.lt.s32.totalorder %s32, 1
        %s624 = scalar_select %p623, %s32, 1
        %s625 = scalar_lea.vmem %s6, %s624
        %p626 = scmp.lt.s32.totalorder %s32, 1
        %s627 = scalar_select %p626, %s32, 1
        %s628 = scalar_lea.vmem %s7, %s627
        %p629 = scmp.lt.s32.totalorder %s32, 1
        %s630 = scalar_select %p629, %s32, 1
        %s631 = scalar_lea.vmem %s8, %s630
        %p632 = scmp.lt.s32.totalorder %s32, 1
        %s633 = scalar_select %p632, %s32, 1
        %s634 = smul.addr %s633, 16
        %s635 = smul.addr %s634, 4
        %s636 = scalar_lea.vmem %s9, %s635
        %p637 = scmp.lt.s32.totalorder %s32, 1
        %s638 = scalar_select %p637, %s32, 1
        %s639 = smul.addr %s638, 2
        %s640 = scalar_lea.vmem %s10, %s639
        %p641 = scmp.lt.s32.totalorder %s32, 1
        %s642 = scalar_select %p641, %s32, 1
        %s643 = smul.addr %s642, 32
        %s644 = smul.addr %s643, 4
        %s645 = scalar_lea.vmem %s11, %s644
        %p646 = scmp.lt.s32.totalorder %s32, 1
        %s647 = scalar_select %p646, %s32, 1
        %s648 = scalar_lea.vmem %s12, %s647
        %p650 = scmp.eq.s32.totalorder %s32, 0
        // Predicated region
        $region73: #{tpu_custom_call.1} parent=71 // pred_check
          %p651 = pneg %p650
        $region74: #{tpu_custom_call.1} parent=71 // pred_check_branch
          %653 = sbr.rel (%p651) target = $region76
        $region75: #{tpu_custom_call.1} parent=71 // pred_region
          %v654 = vld [vmem:[%s602] sm:$0xff]
          %v655 = vld [vmem:[%s602 + $0x8] sm:$0xff]
          %vm656 = vcmask 523264
          %657 = vst.msk [vmem:[#allocation2] sm:$0xff] %vm656, %v654
          %658 = vst.msk [vmem:[#allocation2 + $0x8] sm:$0xff] %vm656, %v655
        $region76: #{tpu_custom_call.1} parent=71 // pred_fallthru
          _
        %v659 = vld [vmem:[#allocation2] sm:$0xff]
        %v660 = vld [vmem:[#allocation2 + $0x8] sm:$0xff]
        %v661 = vld [vmem:[%s605] sm:$0x1]
        %v662 = vld [vmem:[%s608] sm:$0x1]
        %vm663 = vcmask 523264
        %v664 = vsel %vm663, %v659, 0.0
        %665 = vadd.xlane.f32.xlu0 %v664
        %v666 = vpop.xlane.xlu0 %665
        %v667 = vsel %vm663, %v660, 0.0
        %668 = vadd.xlane.f32.xlu0 %v667
        %v669 = vpop.xlane.xlu0 %668
        %v670 = vrcp.pop 64.0
        %v671 = vmul.f32 %v666, %v670
        %v672 = vmul.f32 %v669, %v670
        %v673 = vsub.f32 %v659, %v671
        %v674 = vsub.f32 %v660, %v672
        %v675 = vmul.f32 %v673, %v673
        %v676 = vmul.f32 %v674, %v674
        %v677 = vsel %vm663, %v675, 0.0
        %678 = vadd.xlane.f32.xlu0 %v677
        %v679 = vpop.xlane.xlu0 %678
        %v680 = vsel %vm663, %v676, 0.0
        %681 = vadd.xlane.f32.xlu0 %v680
        %v682 = vpop.xlane.xlu0 %681
        %v683 = vmul.f32 %v679, %v670
        %v684 = vmul.f32 %v682, %v670
        %v685 = vadd.f32 %v683, 1e-05
        %v686 = vadd.f32 %v684, 1e-05
        %v687 = vrsqrt.pop %v685
        %v688 = vrsqrt.pop %v686
        %v689 = vmul.f32 %v673, %v687
        %v690 = vmul.f32 %v674, %v688
        %v692 = vlaneseq
        %v693 = vshrl.u32 %v692, 7
        %v694 = vsub.s32 0, %v693
        %v695 = vrot.slane %v661, %v694
        %v697 = vmul.f32 %v689, %v695
        %v698 = vmul.f32 %v690, %v695
        %v700 = vlaneseq
        %v701 = vshrl.u32 %v700, 7
        %v702 = vsub.s32 0, %v701
        %v703 = vrot.slane %v662, %v702
        %v705 = vadd.f32 %v697, %v703
        %v706 = vadd.f32 %v698, %v703
        %v707 = vpack.c.bf16 %v706, %v705
        %v708 = vld [vmem:[%s613] sm:$0xff]
        %v709 = vld [vmem:[%s613 + $0x8] sm:$0xff]
        %v710 = vld [vmem:[%s613 + $0x10] sm:$0xff]
        %v711 = vld [vmem:[%s613 + $0x18] sm:$0xff]
        %v712 = vld [vmem:[%s613 + $0x20] sm:$0xff]
        %v713 = vld [vmem:[%s613 + $0x28] sm:$0xff]
        %v714 = vld [vmem:[%s613 + $0x30] sm:$0xff]
        %v715 = vld [vmem:[%s613 + $0x38] sm:$0xff]
        %v716 = vld [vmem:[%s617] sm:$0x3]
        %v718 = vlaneseq
        %v719 = vshrl.u32 %v718, 7
        %v720 = vsub.s32 0, %v719
        %v721 = vrot.slane %v716, %v720
        %v722 = vlaneseq
        %v723 = vshrl.u32 %v722, 7
        %v724 = vsub.s32 1, %v723
        %v725 = vrot.slane %v716, %v724
        %v736 = vunpack.c.l.b16 %v708
        %v737 = vunpack.c.h.b16 %v708
        %v738 = vunpack.c.l.b16 %v709
        %v739 = vunpack.c.h.b16 %v709
        %v740 = vunpack.c.l.b16 %v710
        %v741 = vunpack.c.h.b16 %v710
        %v742 = vunpack.c.l.b16 %v711
        %v743 = vunpack.c.h.b16 %v711
        %v744 = vunpack.c.l.b16 %v712
        %v745 = vunpack.c.h.b16 %v712
        %v746 = vunpack.c.l.b16 %v713
        %v747 = vunpack.c.h.b16 %v713
        %v748 = vunpack.c.l.b16 %v714
        %v749 = vunpack.c.h.b16 %v714
        %v750 = vunpack.c.l.b16 %v715
        %v751 = vunpack.c.h.b16 %v715
        %v752 = vpack.c.b16 %v738, %v736
        %v753 = vpack.c.b16 %v739, %v737
        %v754 = vpack.c.b16 %v742, %v740
        %v755 = vpack.c.b16 %v743, %v741
        %v756 = vpack.c.b16 %v746, %v744
        %v757 = vpack.c.b16 %v747, %v745
        %v758 = vpack.c.b16 %v750, %v748
        %v759 = vpack.c.b16 %v751, %v749
        %v769 = vsel %vm663, %v707, 0
        %771 = vmatprep.subr.bf16.mxu0 %v753
        %772 = vmatpush1.bf16.msra.mxu0 %v752
        %773 = vmatprep.subr.bf16.mxu0 %v755
        %774 = vmatpush1.bf16.msra.mxu0 %v754
        %775 = vmatprep.subr.bf16.mxu0 %v757
        %776 = vmatpush1.bf16.msra.mxu0 %v756
        %777 = vmatprep.subr.bf16.mxu0 %v759
        %778 = vmatpush1.bf16.msra.mxu0 %v758
        %779 = vmatprep.subr.bf16.mxu0 0
        %780 = vmatpush1.bf16.msra.mxu0 0
        %781 = vmatprep.subr.bf16.mxu0 0
        %782 = vmatpush1.bf16.msra.mxu0 0
        %783 = vmatprep.subr.bf16.mxu0 0
        %784 = vmatpush1.bf16.msra.mxu0 0
        %785 = vmatprep.subr.bf16.mxu0 0
        %786 = vmatpush1.bf16.msra.mxu0 0
        %787 = vmatprep.subr.bf16.mxu0 0
        %788 = vmatpush1.bf16.msra.mxu0 0
        %789 = vmatprep.subr.bf16.mxu0 0
        %790 = vmatpush1.bf16.msra.mxu0 0
        %791 = vmatprep.subr.bf16.mxu0 0
        %792 = vmatpush1.bf16.msra.mxu0 0
        %793 = vmatprep.subr.bf16.mxu0 0
        %794 = vmatpush1.bf16.msra.mxu0 0
        %795 = vmatprep.subr.bf16.mxu0 0
        %796 = vmatpush1.bf16.msra.mxu0 0
        %797 = vmatprep.subr.bf16.mxu0 0
        %798 = vmatpush1.bf16.msra.mxu0 0
        %799 = vmatprep.subr.bf16.mxu0 0
        %800 = vmatpush1.bf16.msra.mxu0 0
        %801 = vmatprep.subr.bf16.mxu0 0
        %802 = vmatpush1.bf16.msra.mxu0 0
        %803 = vmatprep.mubr.bf16.mxu0 0
        %804 = vmatmul.mubr.bf16.gmra.mrb[0].mxu0 %v769
        %v805 = vpop.f32.mrb[0].mxu0
        %v806 = vadd.f32 %v721, %v805
        %v807 = vpop.f32.mrb[0].mxu0
        %v808 = vadd.f32 %v725, %v807
        %v809 = vpop.f32.mrb[0].mxu0
        %v810 = vadd.f32 %v721, %v809
        %v811 = vpop.f32.mrb[0].mxu0
        %v812 = vadd.f32 %v725, %v811
        %813 = vdwg.mxu0
        %816 = vrot.lane.b32.xlu0 %v806, 112
        %v817 = vpop.permute.xlu0 %816
        %818 = vrot.lane.b32.xlu0 %v810, 112
        %v819 = vpop.permute.xlu0 %818
        %822 = vrot.lane.b32.xlu0 %v806, 96
        %v823 = vpop.permute.xlu0 %822
        %824 = vrot.lane.b32.xlu0 %v810, 96
        %v825 = vpop.permute.xlu0 %824
        %828 = vrot.lane.b32.xlu0 %v806, 80
        %v829 = vpop.permute.xlu0 %828
        %830 = vrot.lane.b32.xlu0 %v810, 80
        %v831 = vpop.permute.xlu0 %830
        %v834 = vmul.f32 %v806, 0.25
        %v835 = vmul.f32 %v810, 0.25
        %v836 = vmul.f32 %v817, 0.25
        %v837 = vmul.f32 %v819, 0.25
        %v838 = vmul.f32 %v823, 0.25
        %v839 = vmul.f32 %v825, 0.25
        %v840 = vmul.f32 %v829, 0.25
        %v841 = vmul.f32 %v831, 0.25
        %844 = vrot.lane.b32.xlu0 %v808, 112
        %v845 = vpop.permute.xlu0 %844
        %846 = vrot.lane.b32.xlu0 %v812, 112
        %v847 = vpop.permute.xlu0 %846
        %850 = vrot.lane.b32.xlu0 %v808, 96
        %v851 = vpop.permute.xlu0 %850
        %852 = vrot.lane.b32.xlu0 %v812, 96
        %v853 = vpop.permute.xlu0 %852
        %856 = vrot.lane.b32.xlu0 %v808, 80
        %v857 = vpop.permute.xlu0 %856
        %858 = vrot.lane.b32.xlu0 %v812, 80
        %v859 = vpop.permute.xlu0 %858
        %v862 = vpack.c.bf16 %v835, %v834
        %v863 = vpack.c.bf16 %v837, %v836
        %v864 = vpack.c.bf16 %v839, %v838
        %v865 = vpack.c.bf16 %v841, %v840
        %v866 = vpack.c.bf16 %v810, %v806
        %v867 = vpack.c.bf16 %v819, %v817
        %v868 = vpack.c.bf16 %v825, %v823
        %v869 = vpack.c.bf16 %v831, %v829
        %871 = vrot.lane.b32.xlu0 %v866, 64
        %v872 = vpop.permute.xlu0 %871
        %vm873 = vcmask 130048
        %v875 = vsel %vm873, %v862, 0
        %v878 = vsel %vm873, %v872, 0
        %880 = vmatprep.subr.bf16.mxu0 0
        %881 = vmatpush1.bf16.xpose.msra.mxu0 %v878
        %882 = vmatprep.subr.bf16.mxu0 0
        %883 = vmatpush1.bf16.xpose.msra.mxu0 0
        %884 = vmatprep.subr.bf16.mxu0 0
        %885 = vmatpush1.bf16.xpose.msra.mxu0 0
        %886 = vmatprep.subr.bf16.mxu0 0
        %887 = vmatpush1.bf16.xpose.msra.mxu0 0
        %888 = vmatprep.subr.bf16.mxu0 0
        %889 = vmatpush1.bf16.xpose.msra.mxu0 0
        %890 = vmatprep.subr.bf16.mxu0 0
        %891 = vmatpush1.bf16.xpose.msra.mxu0 0
        %892 = vmatprep.subr.bf16.mxu0 0
        %893 = vmatpush1.bf16.xpose.msra.mxu0 0
        %894 = vmatprep.subr.bf16.mxu0 0
        %895 = vmatpush1.bf16.xpose.msra.mxu0 0
        %896 = vmatprep.subr.bf16.mxu0 0
        %897 = vmatpush1.bf16.xpose.msra.mxu0 0
        %898 = vmatprep.subr.bf16.mxu0 0
        %899 = vmatpush1.bf16.xpose.msra.mxu0 0
        %900 = vmatprep.subr.bf16.mxu0 0
        %901 = vmatpush1.bf16.xpose.msra.mxu0 0
        %902 = vmatprep.subr.bf16.mxu0 0
        %903 = vmatpush1.bf16.xpose.msra.mxu0 0
        %904 = vmatprep.subr.bf16.mxu0 0
        %905 = vmatpush1.bf16.xpose.msra.mxu0 0
        %906 = vmatprep.subr.bf16.mxu0 0
        %907 = vmatpush1.bf16.xpose.msra.mxu0 0
        %908 = vmatprep.subr.bf16.mxu0 0
        %909 = vmatpush1.bf16.xpose.msra.mxu0 0
        %910 = vmatprep.subr.bf16.mxu0 0
        %911 = vmatpush1.bf16.xpose.msra.mxu0 0
        %912 = vmatprep.mubr.bf16.mxu0 0
        %913 = vmatmul.mubr.bf16.gmra.mrb[0].mxu0 %v875
        %v914 = vpop.f32.mrb[0].mxu0
        %v915 = vadd.f32 0.0, %v914
        %v916 = vpop.f32.mrb[0].mxu0
        %v917 = vpop.f32.mrb[0].mxu0
        %v918 = vadd.f32 0.0, %v917
        %v919 = vpop.f32.mrb[0].mxu0
        %920 = vdwg.mxu0
        %922 = vrot.lane.b32.xlu0 %v867, 64
        %v923 = vpop.permute.xlu0 %922
        %v925 = vsel %vm873, %v863, 0
        %v928 = vsel %vm873, %v923, 0
        %930 = vmatprep.subr.bf16.mxu0 0
        %931 = vmatpush1.bf16.xpose.msra.mxu0 %v928
        %932 = vmatprep.subr.bf16.mxu0 0
        %933 = vmatpush1.bf16.xpose.msra.mxu0 0
        %934 = vmatprep.subr.bf16.mxu0 0
        %935 = vmatpush1.bf16.xpose.msra.mxu0 0
        %936 = vmatprep.subr.bf16.mxu0 0
        %937 = vmatpush1.bf16.xpose.msra.mxu0 0
        %938 = vmatprep.subr.bf16.mxu0 0
        %939 = vmatpush1.bf16.xpose.msra.mxu0 0
        %940 = vmatprep.subr.bf16.mxu0 0
        %941 = vmatpush1.bf16.xpose.msra.mxu0 0
        %942 = vmatprep.subr.bf16.mxu0 0
        %943 = vmatpush1.bf16.xpose.msra.mxu0 0
        %944 = vmatprep.subr.bf16.mxu0 0
        %945 = vmatpush1.bf16.xpose.msra.mxu0 0
        %946 = vmatprep.subr.bf16.mxu0 0
        %947 = vmatpush1.bf16.xpose.msra.mxu0 0
        %948 = vmatprep.subr.bf16.mxu0 0
        %949 = vmatpush1.bf16.xpose.msra.mxu0 0
        %950 = vmatprep.subr.bf16.mxu0 0
        %951 = vmatpush1.bf16.xpose.msra.mxu0 0
        %952 = vmatprep.subr.bf16.mxu0 0
        %953 = vmatpush1.bf16.xpose.msra.mxu0 0
        %954 = vmatprep.subr.bf16.mxu0 0
        %955 = vmatpush1.bf16.xpose.msra.mxu0 0
        %956 = vmatprep.subr.bf16.mxu0 0
        %957 = vmatpush1.bf16.xpose.msra.mxu0 0
        %958 = vmatprep.subr.bf16.mxu0 0
        %959 = vmatpush1.bf16.xpose.msra.mxu0 0
        %960 = vmatprep.subr.bf16.mxu0 0
        %961 = vmatpush1.bf16.xpose.msra.mxu0 0
        %962 = vmatprep.mubr.bf16.mxu0 0
        %963 = vmatmul.mubr.bf16.gmra.mrb[0].mxu0 %v925
        %v964 = vpop.f32.mrb[0].mxu0
        %v965 = vadd.f32 0.0, %v964
        %v966 = vpop.f32.mrb[0].mxu0
        %v967 = vpop.f32.mrb[0].mxu0
        %v968 = vadd.f32 0.0, %v967
        %v969 = vpop.f32.mrb[0].mxu0
        %970 = vdwg.mxu0
        %972 = vrot.lane.b32.xlu0 %v868, 64
        %v973 = vpop.permute.xlu0 %972
        %v975 = vsel %vm873, %v864, 0
        %v978 = vsel %vm873, %v973, 0
        %980 = vmatprep.subr.bf16.mxu0 0
        %981 = vmatpush1.bf16.xpose.msra.mxu0 %v978
        %982 = vmatprep.subr.bf16.mxu0 0
        %983 = vmatpush1.bf16.xpose.msra.mxu0 0
        %984 = vmatprep.subr.bf16.mxu0 0
        %985 = vmatpush1.bf16.xpose.msra.mxu0 0
        %986 = vmatprep.subr.bf16.mxu0 0
        %987 = vmatpush1.bf16.xpose.msra.mxu0 0
        %988 = vmatprep.subr.bf16.mxu0 0
        %989 = vmatpush1.bf16.xpose.msra.mxu0 0
        %990 = vmatprep.subr.bf16.mxu0 0
        %991 = vmatpush1.bf16.xpose.msra.mxu0 0
        %992 = vmatprep.subr.bf16.mxu0 0
        %993 = vmatpush1.bf16.xpose.msra.mxu0 0
        %994 = vmatprep.subr.bf16.mxu0 0
        %995 = vmatpush1.bf16.xpose.msra.mxu0 0
        %996 = vmatprep.subr.bf16.mxu0 0
        %997 = vmatpush1.bf16.xpose.msra.mxu0 0
        %998 = vmatprep.subr.bf16.mxu0 0
        %999 = vmatpush1.bf16.xpose.msra.mxu0 0
        %1000 = vmatprep.subr.bf16.mxu0 0
        %1001 = vmatpush1.bf16.xpose.msra.mxu0 0
        %1002 = vmatprep.subr.bf16.mxu0 0
        %1003 = vmatpush1.bf16.xpose.msra.mxu0 0
        %1004 = vmatprep.subr.bf16.mxu0 0
        %1005 = vmatpush1.bf16.xpose.msra.mxu0 0
        %1006 = vmatprep.subr.bf16.mxu0 0
        %1007 = vmatpush1.bf16.xpose.msra.mxu0 0
        %1008 = vmatprep.subr.bf16.mxu0 0
        %1009 = vmatpush1.bf16.xpose.msra.mxu0 0
        %1010 = vmatprep.subr.bf16.mxu0 0
        %1011 = vmatpush1.bf16.xpose.msra.mxu0 0
        %1012 = vmatprep.mubr.bf16.mxu0 0
        %1013 = vmatmul.mubr.bf16.gmra.mrb[0].mxu0 %v975
        %v1014 = vpop.f32.mrb[0].mxu0
        %v1015 = vadd.f32 0.0, %v1014
        %v1016 = vpop.f32.mrb[0].mxu0
        %v1017 = vpop.f32.mrb[0].mxu0
        %v1018 = vadd.f32 0.0, %v1017
        %v1019 = vpop.f32.mrb[0].mxu0
        %1020 = vdwg.mxu0
        %1022 = vrot.lane.b32.xlu0 %v869, 64
        %v1023 = vpop.permute.xlu0 %1022
        %v1025 = vsel %vm873, %v865, 0
        %v1028 = vsel %vm873, %v1023, 0
        %1030 = vmatprep.subr.bf16.mxu0 0
        %1031 = vmatpush1.bf16.xpose.msra.mxu0 %v1028
        %1032 = vmatprep.subr.bf16.mxu0 0
        %1033 = vmatpush1.bf16.xpose.msra.mxu0 0
        %1034 = vmatprep.subr.bf16.mxu0 0
        %1035 = vmatpush1.bf16.xpose.msra.mxu0 0
        %1036 = vmatprep.subr.bf16.mxu0 0
        %1037 = vmatpush1.bf16.xpose.msra.mxu0 0
        %1038 = vmatprep.subr.bf16.mxu0 0
        %1039 = vmatpush1.bf16.xpose.msra.mxu0 0
        %1040 = vmatprep.subr.bf16.mxu0 0
        %1041 = vmatpush1.bf16.xpose.msra.mxu0 0
        %1042 = vmatprep.subr.bf16.mxu0 0
        %1043 = vmatpush1.bf16.xpose.msra.mxu0 0
        %1044 = vmatprep.subr.bf16.mxu0 0
        %1045 = vmatpush1.bf16.xpose.msra.mxu0 0
        %1046 = vmatprep.subr.bf16.mxu0 0
        %1047 = vmatpush1.bf16.xpose.msra.mxu0 0
        %1048 = vmatprep.subr.bf16.mxu0 0
        %1049 = vmatpush1.bf16.xpose.msra.mxu0 0
        %1050 = vmatprep.subr.bf16.mxu0 0
        %1051 = vmatpush1.bf16.xpose.msra.mxu0 0
        %1052 = vmatprep.subr.bf16.mxu0 0
        %1053 = vmatpush1.bf16.xpose.msra.mxu0 0
        %1054 = vmatprep.subr.bf16.mxu0 0
        %1055 = vmatpush1.bf16.xpose.msra.mxu0 0
        %1056 = vmatprep.subr.bf16.mxu0 0
        %1057 = vmatpush1.bf16.xpose.msra.mxu0 0
        %1058 = vmatprep.subr.bf16.mxu0 0
        %1059 = vmatpush1.bf16.xpose.msra.mxu0 0
        %1060 = vmatprep.subr.bf16.mxu0 0
        %1061 = vmatpush1.bf16.xpose.msra.mxu0 0
        %1062 = vmatprep.mubr.bf16.mxu0 0
        %1063 = vmatmul.mubr.bf16.gmra.mrb[0].mxu0 %v1025
        %v1064 = vpop.f32.mrb[0].mxu0
        %v1065 = vadd.f32 0.0, %v1064
        %v1066 = vpop.f32.mrb[0].mxu0
        %v1067 = vpop.f32.mrb[0].mxu0
        %v1068 = vadd.f32 0.0, %v1067
        %v1069 = vpop.f32.mrb[0].mxu0
        %1070 = vdwg.mxu0
        %v1071 = vlaneseq
        %v1072 = vshrl.u32 %v1071, 7
        %v1073 = vadd.s32 %v1072, 8
        %v1074 = vlaneseq
        %v1075 = vand.u32 %v1074, 127
        %vm1076 = vcmp.le.s32.totalorder %v1075, %v1072
        %vm1077 = vcmp.le.s32.totalorder %v1075, %v1073
        %v1078 = vsel %vm1076, 1, 0
        %v1079 = vsel %vm1077, 1, 0
        %vm1080 = vcmp.eq.s32.totalorder %v1078, 1
        %vm1081 = vcmp.eq.s32.totalorder %v1079, 1
        %v1082 = vsel %vm1080, %v915, -10000.0
        %v1083 = vsel %vm1081, %v918, -10000.0
        %v1084 = vsel %vm1080, %v965, -10000.0
        %v1085 = vsel %vm1081, %v968, -10000.0
        %v1086 = vsel %vm1080, %v1015, -10000.0
        %v1087 = vsel %vm1081, %v1018, -10000.0
        %v1088 = vsel %vm1080, %v1065, -10000.0
        %v1089 = vsel %vm1081, %v1068, -10000.0
        %v1090 = vsel %vm873, %v1082, -inf
        %1091 = vmax.xlane.f32.xlu0 %v1090
        %v1092 = vpop.xlane.xlu0 %1091
        %v1093 = vsel %vm873, %v1083, -inf
        %1094 = vmax.xlane.f32.xlu0 %v1093
        %v1095 = vpop.xlane.xlu0 %1094
        %v1096 = vsel %vm873, %v1084, -inf
        %1097 = vmax.xlane.f32.xlu0 %v1096
        %v1098 = vpop.xlane.xlu0 %1097
        %v1099 = vsel %vm873, %v1085, -inf
        %1100 = vmax.xlane.f32.xlu0 %v1099
        %v1101 = vpop.xlane.xlu0 %1100
        %v1102 = vsel %vm873, %v1086, -inf
        %1103 = vmax.xlane.f32.xlu0 %v1102
        %v1104 = vpop.xlane.xlu0 %1103
        %v1105 = vsel %vm873, %v1087, -inf
        %1106 = vmax.xlane.f32.xlu0 %v1105
        %v1107 = vpop.xlane.xlu0 %1106
        %v1108 = vsel %vm873, %v1088, -inf
        %1109 = vmax.xlane.f32.xlu0 %v1108
        %v1110 = vpop.xlane.xlu0 %1109
        %v1111 = vsel %vm873, %v1089, -inf
        %1112 = vmax.xlane.f32.xlu0 %v1111
        %v1113 = vpop.xlane.xlu0 %1112
        %v1114 = vsub.f32 %v1082, %v1092
        %v1115 = vsub.f32 %v1083, %v1095
        %v1116 = vsub.f32 %v1084, %v1098
        %v1117 = vsub.f32 %v1085, %v1101
        %v1118 = vsub.f32 %v1086, %v1104
        %v1119 = vsub.f32 %v1087, %v1107
        %v1120 = vsub.f32 %v1088, %v1110
        %v1121 = vsub.f32 %v1089, %v1113
        %v1122 = vmul.f32 %v1114, 1.442695
        %v1123 = vpow.pop %v1122
        %v1124 = vmul.f32 %v1115, 1.442695
        %v1125 = vpow.pop %v1124
        %v1126 = vmul.f32 %v1116, 1.442695
        %v1127 = vpow.pop %v1126
        %v1128 = vmul.f32 %v1117, 1.442695
        %v1129 = vpow.pop %v1128
        %v1130 = vmul.f32 %v1118, 1.442695
        %v1131 = vpow.pop %v1130
        %v1132 = vmul.f32 %v1119, 1.442695
        %v1133 = vpow.pop %v1132
        %v1134 = vmul.f32 %v1120, 1.442695
        %v1135 = vpow.pop %v1134
        %v1136 = vmul.f32 %v1121, 1.442695
        %v1137 = vpow.pop %v1136
        %v1138 = vsel %vm873, %v1123, 0.0
        %1139 = vadd.xlane.f32.xlu0 %v1138
        %v1140 = vpop.xlane.xlu0 %1139
        %v1141 = vsel %vm873, %v1125, 0.0
        %1142 = vadd.xlane.f32.xlu0 %v1141
        %v1143 = vpop.xlane.xlu0 %1142
        %v1144 = vsel %vm873, %v1127, 0.0
        %1145 = vadd.xlane.f32.xlu0 %v1144
        %v1146 = vpop.xlane.xlu0 %1145
        %v1147 = vsel %vm873, %v1129, 0.0
        %1148 = vadd.xlane.f32.xlu0 %v1147
        %v1149 = vpop.xlane.xlu0 %1148
        %v1150 = vsel %vm873, %v1131, 0.0
        %1151 = vadd.xlane.f32.xlu0 %v1150
        %v1152 = vpop.xlane.xlu0 %1151
        %v1153 = vsel %vm873, %v1133, 0.0
        %1154 = vadd.xlane.f32.xlu0 %v1153
        %v1155 = vpop.xlane.xlu0 %1154
        %v1156 = vsel %vm873, %v1135, 0.0
        %1157 = vadd.xlane.f32.xlu0 %v1156
        %v1158 = vpop.xlane.xlu0 %1157
        %v1159 = vsel %vm873, %v1137, 0.0
        %1160 = vadd.xlane.f32.xlu0 %v1159
        %v1161 = vpop.xlane.xlu0 %1160
        %v1162 = vrcp.pop %v1140
        %v1163 = vrcp.pop %v1143
        %v1164 = vrcp.pop %v1146
        %v1165 = vrcp.pop %v1149
        %v1166 = vrcp.pop %v1152
        %v1167 = vrcp.pop %v1155
        %v1168 = vrcp.pop %v1158
        %v1169 = vrcp.pop %v1161
        %v1170 = vmul.f32 %v1123, %v1162
        %v1171 = vmul.f32 %v1125, %v1163
        %v1172 = vmul.f32 %v1127, %v1164
        %v1173 = vmul.f32 %v1129, %v1165
        %v1174 = vmul.f32 %v1131, %v1166
        %v1175 = vmul.f32 %v1133, %v1167
        %v1176 = vmul.f32 %v1135, %v1168
        %v1177 = vmul.f32 %v1137, %v1169
        %v1178 = vpack.c.bf16 %v1171, %v1170
        %v1179 = vpack.c.bf16 %v1173, %v1172
        %v1180 = vpack.c.bf16 %v1175, %v1174
        %v1181 = vpack.c.bf16 %v1177, %v1176
        %v1182 = vpack.c.bf16 %v812, %v808
        %v1183 = vpack.c.bf16 %v847, %v845
        %v1184 = vpack.c.bf16 %v853, %v851
        %v1185 = vpack.c.bf16 %v859, %v857
        %v1187 = vsel %vm873, %v1178, 0
        %1189 = vmatprep.subr.bf16.mxu0 0
        %1190 = vmatpush1.bf16.msra.mxu0 %v1182
        %1191 = vmatprep.subr.bf16.mxu0 0
        %1192 = vmatpush1.bf16.msra.mxu0 0
        %1193 = vmatprep.subr.bf16.mxu0 0
        %1194 = vmatpush1.bf16.msra.mxu0 0
        %1195 = vmatprep.subr.bf16.mxu0 0
        %1196 = vmatpush1.bf16.msra.mxu0 0
        %1197 = vmatprep.subr.bf16.mxu0 0
        %1198 = vmatpush1.bf16.msra.mxu0 0
        %1199 = vmatprep.subr.bf16.mxu0 0
        %1200 = vmatpush1.bf16.msra.mxu0 0
        %1201 = vmatprep.subr.bf16.mxu0 0
        %1202 = vmatpush1.bf16.msra.mxu0 0
        %1203 = vmatprep.subr.bf16.mxu0 0
        %1204 = vmatpush1.bf16.msra.mxu0 0
        %1205 = vmatprep.subr.bf16.mxu0 0
        %1206 = vmatpush1.bf16.msra.mxu0 0
        %1207 = vmatprep.subr.bf16.mxu0 0
        %1208 = vmatpush1.bf16.msra.mxu0 0
        %1209 = vmatprep.subr.bf16.mxu0 0
        %1210 = vmatpush1.bf16.msra.mxu0 0
        %1211 = vmatprep.subr.bf16.mxu0 0
        %1212 = vmatpush1.bf16.msra.mxu0 0
        %1213 = vmatprep.subr.bf16.mxu0 0
        %1214 = vmatpush1.bf16.msra.mxu0 0
        %1215 = vmatprep.subr.bf16.mxu0 0
        %1216 = vmatpush1.bf16.msra.mxu0 0
        %1217 = vmatprep.subr.bf16.mxu0 0
        %1218 = vmatpush1.bf16.msra.mxu0 0
        %1219 = vmatprep.subr.bf16.mxu0 0
        %1220 = vmatpush1.bf16.msra.mxu0 0
        %1221 = vmatprep.mubr.bf16.mxu0 0
        %1222 = vmatmul.mubr.bf16.gmra.mrb[0].mxu0 %v1187
        %v1223 = vpop.f32.mrb[0].mxu0
        %v1224 = vadd.f32 0.0, %v1223
        %v1225 = vpop.f32.mrb[0].mxu0
        %v1226 = vpop.f32.mrb[0].mxu0
        %v1227 = vadd.f32 0.0, %v1226
        %v1228 = vpop.f32.mrb[0].mxu0
        %1229 = vdwg.mxu0
        %v1231 = vsel %vm873, %v1179, 0
        %1233 = vmatprep.subr.bf16.mxu0 0
        %1234 = vmatpush1.bf16.msra.mxu0 %v1183
        %1235 = vmatprep.subr.bf16.mxu0 0
        %1236 = vmatpush1.bf16.msra.mxu0 0
        %1237 = vmatprep.subr.bf16.mxu0 0
        %1238 = vmatpush1.bf16.msra.mxu0 0
        %1239 = vmatprep.subr.bf16.mxu0 0
        %1240 = vmatpush1.bf16.msra.mxu0 0
        %1241 = vmatprep.subr.bf16.mxu0 0
        %1242 = vmatpush1.bf16.msra.mxu0 0
        %1243 = vmatprep.subr.bf16.mxu0 0
        %1244 = vmatpush1.bf16.msra.mxu0 0
        %1245 = vmatprep.subr.bf16.mxu0 0
        %1246 = vmatpush1.bf16.msra.mxu0 0
        %1247 = vmatprep.subr.bf16.mxu0 0
        %1248 = vmatpush1.bf16.msra.mxu0 0
        %1249 = vmatprep.subr.bf16.mxu0 0
        %1250 = vmatpush1.bf16.msra.mxu0 0
        %1251 = vmatprep.subr.bf16.mxu0 0
        %1252 = vmatpush1.bf16.msra.mxu0 0
        %1253 = vmatprep.subr.bf16.mxu0 0
        %1254 = vmatpush1.bf16.msra.mxu0 0
        %1255 = vmatprep.subr.bf16.mxu0 0
        %1256 = vmatpush1.bf16.msra.mxu0 0
        %1257 = vmatprep.subr.bf16.mxu0 0
        %1258 = vmatpush1.bf16.msra.mxu0 0
        %1259 = vmatprep.subr.bf16.mxu0 0
        %1260 = vmatpush1.bf16.msra.mxu0 0
        %1261 = vmatprep.subr.bf16.mxu0 0
        %1262 = vmatpush1.bf16.msra.mxu0 0
        %1263 = vmatprep.subr.bf16.mxu0 0
        %1264 = vmatpush1.bf16.msra.mxu0 0
        %1265 = vmatprep.mubr.bf16.mxu0 0
        %1266 = vmatmul.mubr.bf16.gmra.mrb[0].mxu0 %v1231
        %v1267 = vpop.f32.mrb[0].mxu0
        %v1268 = vadd.f32 0.0, %v1267
        %v1269 = vpop.f32.mrb[0].mxu0
        %v1270 = vpop.f32.mrb[0].mxu0
        %v1271 = vadd.f32 0.0, %v1270
        %v1272 = vpop.f32.mrb[0].mxu0
        %1273 = vdwg.mxu0
        %v1275 = vsel %vm873, %v1180, 0
        %1277 = vmatprep.subr.bf16.mxu0 0
        %1278 = vmatpush1.bf16.msra.mxu0 %v1184
        %1279 = vmatprep.subr.bf16.mxu0 0
        %1280 = vmatpush1.bf16.msra.mxu0 0
        %1281 = vmatprep.subr.bf16.mxu0 0
        %1282 = vmatpush1.bf16.msra.mxu0 0
        %1283 = vmatprep.subr.bf16.mxu0 0
        %1284 = vmatpush1.bf16.msra.mxu0 0
        %1285 = vmatprep.subr.bf16.mxu0 0
        %1286 = vmatpush1.bf16.msra.mxu0 0
        %1287 = vmatprep.subr.bf16.mxu0 0
        %1288 = vmatpush1.bf16.msra.mxu0 0
        %1289 = vmatprep.subr.bf16.mxu0 0
        %1290 = vmatpush1.bf16.msra.mxu0 0
        %1291 = vmatprep.subr.bf16.mxu0 0
        %1292 = vmatpush1.bf16.msra.mxu0 0
        %1293 = vmatprep.subr.bf16.mxu0 0
        %1294 = vmatpush1.bf16.msra.mxu0 0
        %1295 = vmatprep.subr.bf16.mxu0 0
        %1296 = vmatpush1.bf16.msra.mxu0 0
        %1297 = vmatprep.subr.bf16.mxu0 0
        %1298 = vmatpush1.bf16.msra.mxu0 0
        %1299 = vmatprep.subr.bf16.mxu0 0
        %1300 = vmatpush1.bf16.msra.mxu0 0
        %1301 = vmatprep.subr.bf16.mxu0 0
        %1302 = vmatpush1.bf16.msra.mxu0 0
        %1303 = vmatprep.subr.bf16.mxu0 0
        %1304 = vmatpush1.bf16.msra.mxu0 0
        %1305 = vmatprep.subr.bf16.mxu0 0
        %1306 = vmatpush1.bf16.msra.mxu0 0
        %1307 = vmatprep.subr.bf16.mxu0 0
        %1308 = vmatpush1.bf16.msra.mxu0 0
        %1309 = vmatprep.mubr.bf16.mxu0 0
        %1310 = vmatmul.mubr.bf16.gmra.mrb[0].mxu0 %v1275
        %v1311 = vpop.f32.mrb[0].mxu0
        %v1312 = vadd.f32 0.0, %v1311
        %v1313 = vpop.f32.mrb[0].mxu0
        %v1314 = vpop.f32.mrb[0].mxu0
        %v1315 = vadd.f32 0.0, %v1314
        %v1316 = vpop.f32.mrb[0].mxu0
        %1317 = vdwg.mxu0
        %v1319 = vsel %vm873, %v1181, 0
        %1321 = vmatprep.subr.bf16.mxu0 0
        %1322 = vmatpush1.bf16.msra.mxu0 %v1185
        %1323 = vmatprep.subr.bf16.mxu0 0
        %1324 = vmatpush1.bf16.msra.mxu0 0
        %1325 = vmatprep.subr.bf16.mxu0 0
        %1326 = vmatpush1.bf16.msra.mxu0 0
        %1327 = vmatprep.subr.bf16.mxu0 0
        %1328 = vmatpush1.bf16.msra.mxu0 0
        %1329 = vmatprep.subr.bf16.mxu0 0
        %1330 = vmatpush1.bf16.msra.mxu0 0
        %1331 = vmatprep.subr.bf16.mxu0 0
        %1332 = vmatpush1.bf16.msra.mxu0 0
        %1333 = vmatprep.subr.bf16.mxu0 0
        %1334 = vmatpush1.bf16.msra.mxu0 0
        %1335 = vmatprep.subr.bf16.mxu0 0
        %1336 = vmatpush1.bf16.msra.mxu0 0
        %1337 = vmatprep.subr.bf16.mxu0 0
        %1338 = vmatpush1.bf16.msra.mxu0 0
        %1339 = vmatprep.subr.bf16.mxu0 0
        %1340 = vmatpush1.bf16.msra.mxu0 0
        %1341 = vmatprep.subr.bf16.mxu0 0
        %1342 = vmatpush1.bf16.msra.mxu0 0
        %1343 = vmatprep.subr.bf16.mxu0 0
        %1344 = vmatpush1.bf16.msra.mxu0 0
        %1345 = vmatprep.subr.bf16.mxu0 0
        %1346 = vmatpush1.bf16.msra.mxu0 0
        %1347 = vmatprep.subr.bf16.mxu0 0
        %1348 = vmatpush1.bf16.msra.mxu0 0
        %1349 = vmatprep.subr.bf16.mxu0 0
        %1350 = vmatpush1.bf16.msra.mxu0 0
        %1351 = vmatprep.subr.bf16.mxu0 0
        %1352 = vmatpush1.bf16.msra.mxu0 0
        %1353 = vmatprep.mubr.bf16.mxu0 0
        %1354 = vmatmul.mubr.bf16.gmra.mrb[0].mxu0 %v1319
        %v1355 = vpop.f32.mrb[0].mxu0
        %v1356 = vadd.f32 0.0, %v1355
        %v1357 = vpop.f32.mrb[0].mxu0
        %v1358 = vpop.f32.mrb[0].mxu0
        %v1359 = vadd.f32 0.0, %v1358
        %v1360 = vpop.f32.mrb[0].mxu0
        %1361 = vdwg.mxu0
        %1364 = vrot.lane.b32.xlu0 %v1268, 16
        %v1365 = vpop.permute.xlu0 %1364
        %1366 = vrot.lane.b32.xlu0 %v1271, 16
        %v1367 = vpop.permute.xlu0 %1366
        %1372 = vrot.lane.b32.xlu0 %v1312, 32
        %v1373 = vpop.permute.xlu0 %1372
        %1374 = vrot.lane.b32.xlu0 %v1315, 32
        %v1375 = vpop.permute.xlu0 %1374
        %1380 = vrot.lane.b32.xlu0 %v1356, 48
        %v1381 = vpop.permute.xlu0 %1380
        %1382 = vrot.lane.b32.xlu0 %v1359, 48
        %v1383 = vpop.permute.xlu0 %1382
        %v1386 = vsel %vm873, %v1224, %v1365
        %v1387 = vsel %vm873, %v1227, %v1367
        %vm1388 = vcmask 261120
        %v1389 = vsel %vm1388, %v1386, %v1373
        %v1390 = vsel %vm1388, %v1387, %v1375
        %vm1391 = vcmask 392192
        %v1392 = vsel %vm1391, %v1389, %v1381
        %v1393 = vsel %vm1391, %v1390, %v1383
        %v1394 = vpack.c.bf16 %v1393, %v1392
        %v1395 = vld [vmem:[%s622] sm:$0xf]
        %v1396 = vld [vmem:[%s622 + $0x4] sm:$0xf]
        %v1397 = vld [vmem:[%s622 + $0x8] sm:$0xf]
        %v1398 = vld [vmem:[%s622 + $0xc] sm:$0xf]
        %v1399 = vld [vmem:[%s622 + $0x10] sm:$0xf]
        %v1400 = vld [vmem:[%s622 + $0x14] sm:$0xf]
        %v1401 = vld [vmem:[%s622 + $0x18] sm:$0xf]
        %v1402 = vld [vmem:[%s622 + $0x1c] sm:$0xf]
        %v1403 = vld [vmem:[%s625] sm:$0x1]
        %v1405 = vlaneseq
        %v1406 = vshrl.u32 %v1405, 7
        %v1407 = vsub.s32 0, %v1406
        %v1408 = vrot.slane %v1403, %v1407
        %v1418 = vunpack.c.l.b16 %v1395
        %v1419 = vunpack.c.l.b16 %v1396
        %v1420 = vunpack.c.l.b16 %v1397
        %v1421 = vunpack.c.l.b16 %v1398
        %v1422 = vunpack.c.l.b16 %v1399
        %v1423 = vunpack.c.l.b16 %v1400
        %v1424 = vunpack.c.l.b16 %v1401
        %v1425 = vunpack.c.l.b16 %v1402
        %v1426 = vpack.c.b16 %v1419, %v1418
        %v1427 = vpack.c.b16 %v1421, %v1420
        %v1428 = vpack.c.b16 %v1423, %v1422
        %v1429 = vpack.c.b16 %v1425, %v1424
        %v1435 = vsel %vm663, %v1394, 0
        %1437 = vmatprep.subr.bf16.mxu0 0
        %1438 = vmatpush1.bf16.msra.mxu0 %v1426
        %1439 = vmatprep.subr.bf16.mxu0 0
        %1440 = vmatpush1.bf16.msra.mxu0 %v1427
        %1441 = vmatprep.subr.bf16.mxu0 0
        %1442 = vmatpush1.bf16.msra.mxu0 %v1428
        %1443 = vmatprep.subr.bf16.mxu0 0
        %1444 = vmatpush1.bf16.msra.mxu0 %v1429
        %1445 = vmatprep.subr.bf16.mxu0 0
        %1446 = vmatpush1.bf16.msra.mxu0 0
        %1447 = vmatprep.subr.bf16.mxu0 0
        %1448 = vmatpush1.bf16.msra.mxu0 0
        %1449 = vmatprep.subr.bf16.mxu0 0
        %1450 = vmatpush1.bf16.msra.mxu0 0
        %1451 = vmatprep.subr.bf16.mxu0 0
        %1452 = vmatpush1.bf16.msra.mxu0 0
        %1453 = vmatprep.subr.bf16.mxu0 0
        %1454 = vmatpush1.bf16.msra.mxu0 0
        %1455 = vmatprep.subr.bf16.mxu0 0
        %1456 = vmatpush1.bf16.msra.mxu0 0
        %1457 = vmatprep.subr.bf16.mxu0 0
        %1458 = vmatpush1.bf16.msra.mxu0 0
        %1459 = vmatprep.subr.bf16.mxu0 0
        %1460 = vmatpush1.bf16.msra.mxu0 0
        %1461 = vmatprep.subr.bf16.mxu0 0
        %1462 = vmatpush1.bf16.msra.mxu0 0
        %1463 = vmatprep.subr.bf16.mxu0 0
        %1464 = vmatpush1.bf16.msra.mxu0 0
        %1465 = vmatprep.subr.bf16.mxu0 0
        %1466 = vmatpush1.bf16.msra.mxu0 0
        %1467 = vmatprep.subr.bf16.mxu0 0
        %1468 = vmatpush1.bf16.msra.mxu0 0
        %1469 = vmatprep.mubr.bf16.mxu0 0
        %1470 = vmatmul.mubr.bf16.gmra.mrb[0].mxu0 %v1435
        %v1471 = vpop.f32.mrb[0].mxu0
        %v1472 = vadd.f32 %v1408, %v1471
        %v1473 = vpop.f32.mrb[0].mxu0
        %v1474 = vpop.f32.mrb[0].mxu0
        %v1475 = vadd.f32 %v1408, %v1474
        %v1476 = vpop.f32.mrb[0].mxu0
        %1477 = vdwg.mxu0
        %v1478 = vadd.f32 %v659, %v1472
        %v1479 = vadd.f32 %v660, %v1475
        %v1480 = vld [vmem:[%s628] sm:$0x1]
        %v1481 = vld [vmem:[%s631] sm:$0x1]
        %v1482 = vsel %vm663, %v1478, 0.0
        %1483 = vadd.xlane.f32.xlu0 %v1482
        %v1484 = vpop.xlane.xlu0 %1483
        %v1485 = vsel %vm663, %v1479, 0.0
        %1486 = vadd.xlane.f32.xlu0 %v1485
        %v1487 = vpop.xlane.xlu0 %1486
        %v1488 = vmul.f32 %v1484, %v670
        %v1489 = vmul.f32 %v1487, %v670
        %v1490 = vsub.f32 %v1478, %v1488
        %v1491 = vsub.f32 %v1479, %v1489
        %v1492 = vmul.f32 %v1490, %v1490
        %v1493 = vmul.f32 %v1491, %v1491
        %v1494 = vsel %vm663, %v1492, 0.0
        %1495 = vadd.xlane.f32.xlu0 %v1494
        %v1496 = vpop.xlane.xlu0 %1495
        %v1497 = vsel %vm663, %v1493, 0.0
        %1498 = vadd.xlane.f32.xlu0 %v1497
        %v1499 = vpop.xlane.xlu0 %1498
        %v1500 = vmul.f32 %v1496, %v670
        %v1501 = vmul.f32 %v1499, %v670
        %v1502 = vadd.f32 %v1500, 1e-05
        %v1503 = vadd.f32 %v1501, 1e-05
        %v1504 = vrsqrt.pop %v1502
        %v1505 = vrsqrt.pop %v1503
        %v1506 = vmul.f32 %v1490, %v1504
        %v1507 = vmul.f32 %v1491, %v1505
        %v1509 = vlaneseq
        %v1510 = vshrl.u32 %v1509, 7
        %v1511 = vsub.s32 0, %v1510
        %v1512 = vrot.slane %v1480, %v1511
        %v1514 = vmul.f32 %v1506, %v1512
        %v1515 = vmul.f32 %v1507, %v1512
        %v1517 = vlaneseq
        %v1518 = vshrl.u32 %v1517, 7
        %v1519 = vsub.s32 0, %v1518
        %v1520 = vrot.slane %v1481, %v1519
        %v1522 = vadd.f32 %v1514, %v1520
        %v1523 = vadd.f32 %v1515, %v1520
        %v1524 = vpack.c.bf16 %v1523, %v1522
        %v1525 = vld [vmem:[%s636] sm:$0xff]
        %v1526 = vld [vmem:[%s636 + $0x8] sm:$0xff]
        %v1527 = vld [vmem:[%s636 + $0x10] sm:$0xff]
        %v1528 = vld [vmem:[%s636 + $0x18] sm:$0xff]
        %v1529 = vld [vmem:[%s636 + $0x20] sm:$0xff]
        %v1530 = vld [vmem:[%s636 + $0x28] sm:$0xff]
        %v1531 = vld [vmem:[%s636 + $0x30] sm:$0xff]
        %v1532 = vld [vmem:[%s636 + $0x38] sm:$0xff]
        %v1533 = vld [vmem:[%s640] sm:$0x3]
        %v1535 = vlaneseq
        %v1536 = vshrl.u32 %v1535, 7
        %v1537 = vsub.s32 0, %v1536
        %v1538 = vrot.slane %v1533, %v1537
        %v1539 = vlaneseq
        %v1540 = vshrl.u32 %v1539, 7
        %v1541 = vsub.s32 1, %v1540
        %v1542 = vrot.slane %v1533, %v1541
        %v1553 = vunpack.c.l.b16 %v1525
        %v1554 = vunpack.c.h.b16 %v1525
        %v1555 = vunpack.c.l.b16 %v1526
        %v1556 = vunpack.c.h.b16 %v1526
        %v1557 = vunpack.c.l.b16 %v1527
        %v1558 = vunpack.c.h.b16 %v1527
        %v1559 = vunpack.c.l.b16 %v1528
        %v1560 = vunpack.c.h.b16 %v1528
        %v1561 = vunpack.c.l.b16 %v1529
        %v1562 = vunpack.c.h.b16 %v1529
        %v1563 = vunpack.c.l.b16 %v1530
        %v1564 = vunpack.c.h.b16 %v1530
        %v1565 = vunpack.c.l.b16 %v1531
        %v1566 = vunpack.c.h.b16 %v1531
        %v1567 = vunpack.c.l.b16 %v1532
        %v1568 = vunpack.c.h.b16 %v1532
        %v1569 = vpack.c.b16 %v1555, %v1553
        %v1570 = vpack.c.b16 %v1556, %v1554
        %v1571 = vpack.c.b16 %v1559, %v1557
        %v1572 = vpack.c.b16 %v1560, %v1558
        %v1573 = vpack.c.b16 %v1563, %v1561
        %v1574 = vpack.c.b16 %v1564, %v1562
        %v1575 = vpack.c.b16 %v1567, %v1565
        %v1576 = vpack.c.b16 %v1568, %v1566
        %v1586 = vsel %vm663, %v1524, 0
        %1588 = vmatprep.subr.bf16.mxu0 %v1570
        %1589 = vmatpush1.bf16.msra.mxu0 %v1569
        %1590 = vmatprep.subr.bf16.mxu0 %v1572
        %1591 = vmatpush1.bf16.msra.mxu0 %v1571
        %1592 = vmatprep.subr.bf16.mxu0 %v1574
        %1593 = vmatpush1.bf16.msra.mxu0 %v1573
        %1594 = vmatprep.subr.bf16.mxu0 %v1576
        %1595 = vmatpush1.bf16.msra.mxu0 %v1575
        %1596 = vmatprep.subr.bf16.mxu0 0
        %1597 = vmatpush1.bf16.msra.mxu0 0
        %1598 = vmatprep.subr.bf16.mxu0 0
        %1599 = vmatpush1.bf16.msra.mxu0 0
        %1600 = vmatprep.subr.bf16.mxu0 0
        %1601 = vmatpush1.bf16.msra.mxu0 0
        %1602 = vmatprep.subr.bf16.mxu0 0
        %1603 = vmatpush1.bf16.msra.mxu0 0
        %1604 = vmatprep.subr.bf16.mxu0 0
        %1605 = vmatpush1.bf16.msra.mxu0 0
        %1606 = vmatprep.subr.bf16.mxu0 0
        %1607 = vmatpush1.bf16.msra.mxu0 0
        %1608 = vmatprep.subr.bf16.mxu0 0
        %1609 = vmatpush1.bf16.msra.mxu0 0
        %1610 = vmatprep.subr.bf16.mxu0 0
        %1611 = vmatpush1.bf16.msra.mxu0 0
        %1612 = vmatprep.subr.bf16.mxu0 0
        %1613 = vmatpush1.bf16.msra.mxu0 0
        %1614 = vmatprep.subr.bf16.mxu0 0
        %1615 = vmatpush1.bf16.msra.mxu0 0
        %1616 = vmatprep.subr.bf16.mxu0 0
        %1617 = vmatpush1.bf16.msra.mxu0 0
        %1618 = vmatprep.subr.bf16.mxu0 0
        %1619 = vmatpush1.bf16.msra.mxu0 0
        %1620 = vmatprep.mubr.bf16.mxu0 0
        %1621 = vmatmul.mubr.bf16.gmra.mrb[0].mxu0 %v1586
        %v1622 = vpop.f32.mrb[0].mxu0
        %v1623 = vadd.f32 %v1538, %v1622
        %v1624 = vpop.f32.mrb[0].mxu0
        %v1625 = vadd.f32 %v1542, %v1624
        %v1626 = vpop.f32.mrb[0].mxu0
        %v1627 = vadd.f32 %v1538, %v1626
        %v1628 = vpop.f32.mrb[0].mxu0
        %v1629 = vadd.f32 %v1542, %v1628
        %1630 = vdwg.mxu0
        %v1631 = vmul.f32 %v1623, 0.5
        %v1632 = vmul.f32 %v1625, 0.5
        %v1633 = vmul.f32 %v1627, 0.5
        %v1634 = vmul.f32 %v1629, 0.5
        %v1635 = vmul.f32 %v1623, 0.044715
        %v1636 = vmul.f32 %v1625, 0.044715
        %v1637 = vmul.f32 %v1627, 0.044715
        %v1638 = vmul.f32 %v1629, 0.044715
        %v1639 = vmul.f32 %v1635, %v1623
        %v1640 = vmul.f32 %v1636, %v1625
        %v1641 = vmul.f32 %v1637, %v1627
        %v1642 = vmul.f32 %v1638, %v1629
        %v1643 = vmul.f32 %v1639, %v1623
        %v1644 = vmul.f32 %v1640, %v1625
        %v1645 = vmul.f32 %v1641, %v1627
        %v1646 = vmul.f32 %v1642, %v1629
        %v1647 = vadd.f32 %v1623, %v1643
        %v1648 = vadd.f32 %v1625, %v1644
        %v1649 = vadd.f32 %v1627, %v1645
        %v1650 = vadd.f32 %v1629, %v1646
        %v1651 = vmul.f32 %v1647, 0.7978845
        %v1652 = vmul.f32 %v1648, 0.7978845
        %v1653 = vmul.f32 %v1649, 0.7978845
        %v1654 = vmul.f32 %v1650, 0.7978845
        %v1655 = vtanh.pop %v1651
        %v1656 = vtanh.pop %v1652
        %v1657 = vtanh.pop %v1653
        %v1658 = vtanh.pop %v1654
        %v1659 = vadd.f32 %v1655, 1.0
        %v1660 = vadd.f32 %v1656, 1.0
        %v1661 = vadd.f32 %v1657, 1.0
        %v1662 = vadd.f32 %v1658, 1.0
        %v1663 = vmul.f32 %v1631, %v1659
        %v1664 = vmul.f32 %v1632, %v1660
        %v1665 = vmul.f32 %v1633, %v1661
        %v1666 = vmul.f32 %v1634, %v1662
        %v1667 = vpack.c.bf16 %v1665, %v1663
        %v1668 = vpack.c.bf16 %v1666, %v1664
        %v1669 = vld [vmem:[%s645] sm:$0xf]
        %v1670 = vld [vmem:[%s645 + $0x4] sm:$0xf]
        %v1671 = vld [vmem:[%s645 + $0x8] sm:$0xf]
        %v1672 = vld [vmem:[%s645 + $0xc] sm:$0xf]
        %v1673 = vld [vmem:[%s645 + $0x10] sm:$0xf]
        %v1674 = vld [vmem:[%s645 + $0x14] sm:$0xf]
        %v1675 = vld [vmem:[%s645 + $0x18] sm:$0xf]
        %v1676 = vld [vmem:[%s645 + $0x1c] sm:$0xf]
        %v1677 = vld [vmem:[%s645 + $0x20] sm:$0xf]
        %v1678 = vld [vmem:[%s645 + $0x24] sm:$0xf]
        %v1679 = vld [vmem:[%s645 + $0x28] sm:$0xf]
        %v1680 = vld [vmem:[%s645 + $0x2c] sm:$0xf]
        %v1681 = vld [vmem:[%s645 + $0x30] sm:$0xf]
        %v1682 = vld [vmem:[%s645 + $0x34] sm:$0xf]
        %v1683 = vld [vmem:[%s645 + $0x38] sm:$0xf]
        %v1684 = vld [vmem:[%s645 + $0x3c] sm:$0xf]
        %v1685 = vld [vmem:[%s645 + $0x40] sm:$0xf]
        %v1686 = vld [vmem:[%s645 + $0x44] sm:$0xf]
        %v1687 = vld [vmem:[%s645 + $0x48] sm:$0xf]
        %v1688 = vld [vmem:[%s645 + $0x4c] sm:$0xf]
        %v1689 = vld [vmem:[%s645 + $0x50] sm:$0xf]
        %v1690 = vld [vmem:[%s645 + $0x54] sm:$0xf]
        %v1691 = vld [vmem:[%s645 + $0x58] sm:$0xf]
        %v1692 = vld [vmem:[%s645 + $0x5c] sm:$0xf]
        %v1693 = vld [vmem:[%s645 + $0x60] sm:$0xf]
        %v1694 = vld [vmem:[%s645 + $0x64] sm:$0xf]
        %v1695 = vld [vmem:[%s645 + $0x68] sm:$0xf]
        %v1696 = vld [vmem:[%s645 + $0x6c] sm:$0xf]
        %v1697 = vld [vmem:[%s645 + $0x70] sm:$0xf]
        %v1698 = vld [vmem:[%s645 + $0x74] sm:$0xf]
        %v1699 = vld [vmem:[%s645 + $0x78] sm:$0xf]
        %v1700 = vld [vmem:[%s645 + $0x7c] sm:$0xf]
        %v1701 = vld [vmem:[%s648] sm:$0x1]
        %v1703 = vlaneseq
        %v1704 = vshrl.u32 %v1703, 7
        %v1705 = vsub.s32 0, %v1704
        %v1706 = vrot.slane %v1701, %v1705
        %v1740 = vunpack.c.l.b16 %v1669
        %v1741 = vunpack.c.l.b16 %v1670
        %v1742 = vunpack.c.l.b16 %v1671
        %v1743 = vunpack.c.l.b16 %v1672
        %v1744 = vunpack.c.l.b16 %v1673
        %v1745 = vunpack.c.l.b16 %v1674
        %v1746 = vunpack.c.l.b16 %v1675
        %v1747 = vunpack.c.l.b16 %v1676
        %v1748 = vunpack.c.l.b16 %v1677
        %v1749 = vunpack.c.l.b16 %v1678
        %v1750 = vunpack.c.l.b16 %v1679
        %v1751 = vunpack.c.l.b16 %v1680
        %v1752 = vunpack.c.l.b16 %v1681
        %v1753 = vunpack.c.l.b16 %v1682
        %v1754 = vunpack.c.l.b16 %v1683
        %v1755 = vunpack.c.l.b16 %v1684
        %v1756 = vunpack.c.l.b16 %v1685
        %v1757 = vunpack.c.l.b16 %v1686
        %v1758 = vunpack.c.l.b16 %v1687
        %v1759 = vunpack.c.l.b16 %v1688
        %v1760 = vunpack.c.l.b16 %v1689
        %v1761 = vunpack.c.l.b16 %v1690
        %v1762 = vunpack.c.l.b16 %v1691
        %v1763 = vunpack.c.l.b16 %v1692
        %v1764 = vunpack.c.l.b16 %v1693
        %v1765 = vunpack.c.l.b16 %v1694
        %v1766 = vunpack.c.l.b16 %v1695
        %v1767 = vunpack.c.l.b16 %v1696
        %v1768 = vunpack.c.l.b16 %v1697
        %v1769 = vunpack.c.l.b16 %v1698
        %v1770 = vunpack.c.l.b16 %v1699
        %v1771 = vunpack.c.l.b16 %v1700
        %v1772 = vpack.c.b16 %v1741, %v1740
        %v1773 = vpack.c.b16 %v1743, %v1742
        %v1774 = vpack.c.b16 %v1745, %v1744
        %v1775 = vpack.c.b16 %v1747, %v1746
        %v1776 = vpack.c.b16 %v1749, %v1748
        %v1777 = vpack.c.b16 %v1751, %v1750
        %v1778 = vpack.c.b16 %v1753, %v1752
        %v1779 = vpack.c.b16 %v1755, %v1754
        %v1780 = vpack.c.b16 %v1757, %v1756
        %v1781 = vpack.c.b16 %v1759, %v1758
        %v1782 = vpack.c.b16 %v1761, %v1760
        %v1783 = vpack.c.b16 %v1763, %v1762
        %v1784 = vpack.c.b16 %v1765, %v1764
        %v1785 = vpack.c.b16 %v1767, %v1766
        %v1786 = vpack.c.b16 %v1769, %v1768
        %v1787 = vpack.c.b16 %v1771, %v1770
        %1804 = vmatprep.subr.bf16.mxu0 0
        %1805 = vmatpush1.bf16.msra.mxu0 %v1772
        %1806 = vmatprep.subr.bf16.mxu0 0
        %1807 = vmatpush1.bf16.msra.mxu0 %v1773
        %1808 = vmatprep.subr.bf16.mxu0 0
        %1809 = vmatpush1.bf16.msra.mxu0 %v1774
        %1810 = vmatprep.subr.bf16.mxu0 0
        %1811 = vmatpush1.bf16.msra.mxu0 %v1775
        %1812 = vmatprep.subr.bf16.mxu0 0
        %1813 = vmatpush1.bf16.msra.mxu0 %v1776
        %1814 = vmatprep.subr.bf16.mxu0 0
        %1815 = vmatpush1.bf16.msra.mxu0 %v1777
        %1816 = vmatprep.subr.bf16.mxu0 0
        %1817 = vmatpush1.bf16.msra.mxu0 %v1778
        %1818 = vmatprep.subr.bf16.mxu0 0
        %1819 = vmatpush1.bf16.msra.mxu0 %v1779
        %1820 = vmatprep.subr.bf16.mxu0 0
        %1821 = vmatpush1.bf16.msra.mxu0 %v1780
        %1822 = vmatprep.subr.bf16.mxu0 0
        %1823 = vmatpush1.bf16.msra.mxu0 %v1781
        %1824 = vmatprep.subr.bf16.mxu0 0
        %1825 = vmatpush1.bf16.msra.mxu0 %v1782
        %1826 = vmatprep.subr.bf16.mxu0 0
        %1827 = vmatpush1.bf16.msra.mxu0 %v1783
        %1828 = vmatprep.subr.bf16.mxu0 0
        %1829 = vmatpush1.bf16.msra.mxu0 %v1784
        %1830 = vmatprep.subr.bf16.mxu0 0
        %1831 = vmatpush1.bf16.msra.mxu0 %v1785
        %1832 = vmatprep.subr.bf16.mxu0 0
        %1833 = vmatpush1.bf16.msra.mxu0 %v1786
        %1834 = vmatprep.subr.bf16.mxu0 0
        %1835 = vmatpush1.bf16.msra.mxu0 %v1787
        %1836 = vmatprep.mubr.bf16.mxu0 %v1668
        %1837 = vmatmul.mubr.bf16.gmra.mrb[0].mxu0 %v1667
        %v1838 = vpop.f32.mrb[0].mxu0
        %v1839 = vadd.f32 %v1706, %v1838
        %v1840 = vpop.f32.mrb[0].mxu0
        %v1841 = vpop.f32.mrb[0].mxu0
        %v1842 = vadd.f32 %v1706, %v1841
        %v1843 = vpop.f32.mrb[0].mxu0
        %1844 = vdwg.mxu0
        %v1845 = vadd.f32 %v1478, %v1839
        %v1846 = vadd.f32 %v1479, %v1842
        %1847 = vst.msk [vmem:[#allocation2] sm:$0xff] %vm663, %v1845
        %1848 = vst.msk [vmem:[#allocation2 + $0x8] sm:$0xff] %vm663, %v1846
        %p1849 = scmp.eq.s32.totalorder %s32, 1
        // Predicated region
        $region77: #{tpu_custom_call.1} parent=71 // pred_check
          %p1850 = pneg %p1849
        $region78: #{tpu_custom_call.1} parent=71 // pred_check_branch
          %1852 = sbr.rel (%p1850) target = $region80
        $region79: #{tpu_custom_call.1} parent=71 // pred_region
          %1853 = vst.msk [vmem:[%s597] sm:$0xff] %vm663, %v1845
          %1854 = vst.msk [vmem:[%s597 + $0x8] sm:$0xff] %vm663, %v1846
        $region80: #{tpu_custom_call.1} parent=71 // pred_fallthru
          _
        %s1855 = sand.u32 %s385, 1
        %s1856 = scalar_lea.sflag [#allocation4], %s1855
        %s1857 = sand.u32 %s385, 1
        %s1858 = smul.addr %s1857, 16
        %s1859 = scalar_lea.vmem [#allocation3], %s1858
        // Predicated region
        $region81: #{tpu_custom_call.1} parent=71 // pred_check
          %p1860 = pneg %p395
        $region82: #{tpu_custom_call.1} parent=71 // pred_check_branch
          %1862 = sbr.rel (%p1860) target = $region84
        $region83: #{tpu_custom_call.1} parent=71 // pred_region
          %s1864 = ssub.s32 256, 256
          %1865 = vsyncadd %s1856, %s1864
          %s1866 = smul.addr %s31, 2
          %s1867 = smul.addr %s1866, 128
          %s1868 = scalar_lea.hbm %s13, %s1867
          %s1869 = sshll.u32 %s1859, 4
          %s1870 = int_to_ptr.vmem [resolvable:$true] %s1869
          %1875 = dma.vmem_to_hbm [thread:$0]  %s1870, 256, %s1868, %s1856, 128, 128, 8
        $region84: #{tpu_custom_call.1} parent=71 // pred_fallthru
          _
      $region72: #{tpu_custom_call.1} parent=5 // pred_fallthru
        _
      %p1876 = scmp.le.s32.totalorder 2, %s22
      // Predicated region
      $region85: #{tpu_custom_call.1} parent=5 // pred_check
        %p1877 = pneg %p1876
      $region86: #{tpu_custom_call.1} parent=5 // pred_check_branch
        %1879 = sbr.rel (%p1877) target = $region88
      $region87: #{tpu_custom_call.1} parent=5 // pred_region
        %s1880 = ssub.s32 %s22, 2
        // Predicated region
        $region89: #{tpu_custom_call.1} parent=87 // pred_check
          %p1881 = pneg %p401
        $region90: #{tpu_custom_call.1} parent=87 // pred_check_branch
          %1883 = sbr.rel (%p1881) target = $region92
        $region91: #{tpu_custom_call.1} parent=87 // pred_region
          %s1884 = sand.u32 %s386, 1
          %s1885 = scalar_lea.sflag [#allocation4], %s1884
          %s1886 = sand.u32 %s386, 1
          %s1887 = smul.addr %s1886, 16
          %s1888 = scalar_lea.vmem [#allocation3], %s1887
          %1889 = dma.done %s1885, 256
        $region92: #{tpu_custom_call.1} parent=87 // pred_fallthru
          _
      $region88: #{tpu_custom_call.1} parent=5 // pred_fallthru
        _
    $region6: #{tpu_custom_call.1} parent=1 // loop_footer
      %s26 = sadd.s32 1, %s22
    $region7: #{tpu_custom_call.1} parent=1 // loop_footer_branch
      %21 = sbr.rel target = $region3
    $region8: #{tpu_custom_call.1} parent=1 // loop_exit
      _
    %1890 = vsyncpa [#allocation4], 1
    %s1891 = scalar_lea.sflag [#allocation4], 1
    %1892 = vsyncpa %s1891, 1

</llo_original>
